<compile_context>
chip_gen: v7x
topology: tpu7x:2x2x1
jax: 0.10.0
libtpu: 0.0.40
codegen_flags: <defaults>
</compile_context>

<pallas_src>
import functools

import jax
import jax.numpy as jnp
from jax import lax
from jax.experimental import pallas as pl
from jax.experimental.pallas import tpu as pltpu


def _attention_kernel(x_ref, wqkv_ref, bqkv_ref, wp_ref, bp_ref, out_ref,
                      o_scratch, *, num_heads, valid_n):
    bt, n, c = x_ref.shape                 # (batch-block, padded tokens, channels)
    ahd3 = wqkv_ref.shape[1]
    ahd = ahd3 // 3
    hd = ahd // num_heads
    rows = bt * n

    # Flatten tokens of all batch elements in this block: (bt*N, C).  N is a
    # multiple of 8 (wrapper pads), so this merge of leading dims is
    # layout-trivial.
    x = x_ref[...].reshape(rows, c)
    cdt = x.dtype                          # MXU compute dtype (bf16)

    # ---- One fused, full-output-width QKV projection (MXU) -----------------
    # Output width 3*ahd (= 3*C at ViT widths) instead of H*3 matmuls of
    # width hd; fp32 accumulation, fp32 fused bias (q part pre-scaled, k part
    # zero on the k_bias=False path).
    qkv = jnp.dot(x, wqkv_ref[...], preferred_element_type=jnp.float32)
    qkv = qkv + bqkv_ref[...]

    # ---- Per-head attention -------------------------------------------------
    # Static unroll: the body is small now (no weight loads, no carried fp32
    # accumulator — results go straight to the VMEM scratch), so live ranges
    # stay bounded even fully unrolled.
    neg_big = jnp.float32(-1e30)
    for h in range(num_heads):
        q = qkv[:, h * hd:(h + 1) * hd].reshape(bt, n, hd).astype(cdt)
        k = qkv[:, ahd + h * hd:ahd + (h + 1) * hd].reshape(bt, n, hd).astype(cdt)
        v = qkv[:, 2 * ahd + h * hd:2 * ahd + (h + 1) * hd].reshape(bt, n, hd).astype(cdt)

        # Scaled dot-product attention (scale already folded into Q).
        s = jnp.einsum('bnd,bmd->bnm', q, k,
                       preferred_element_type=jnp.float32)       # (bt, N, N)
        if valid_n != n:   # static: mask padded key columns (wrapper padding)
            col = lax.broadcasted_iota(jnp.int32, (1, 1, n), 2)
            s = jnp.where(col < valid_n, s, neg_big)

        m = jnp.max(s, axis=-1, keepdims=True)
        e = jnp.exp(s - m)
        p = e * pl.reciprocal(jnp.sum(e, axis=-1, keepdims=True), approx=True)

        o = jnp.einsum('bnm,bmd->bnd', p.astype(cdt), v,
                       preferred_element_type=jnp.float32)       # (bt, N, hd)

        # Lane-contiguous per-head slab of the (rows, ahd) attention output.
        o_scratch[:, h * hd:(h + 1) * hd] = o.reshape(rows, hd).astype(cdt)

    # ---- Single output projection, full contraction depth K = ahd ----------
    y = jnp.dot(o_scratch[...], wp_ref[...], preferred_element_type=jnp.float32)
    y = y + bp_ref[...]
    out_ref[...] = y.reshape(bt, n, c).astype(out_ref.dtype)


def _pick_block_b(batch, seq, target_rows=512):
    """Batch elements per grid step.

    Pick the largest divisor of `batch` with ~target_rows flattened tokens per
    step (MXU M-fill, amortizes the ~0.35 us per-grid-step overhead).  No
    forced split for megacore: v5e/v6e have a single TensorCore; on v7x,
    callers who want both TCs busy can pass block_b explicitly so nb >= 2.
    """
    bb = max(1, min(batch, target_rows // max(seq, 1)))
    while batch % bb:
        bb -= 1
    return bb


def attention_forward(x, w_qkv, qkv_bias_vec, w_proj, b_proj, *, num_heads,
                      block_b=None, compute_dtype=jnp.bfloat16,
                      vmem_limit_bytes=48 * 1024 * 1024):
    """x: (B, N, C).  Returns (B, N, C) in x's dtype."""
    B, N, C = x.shape
    out_dtype = x.dtype
    ahd = w_qkv.shape[0] // 3
    H = num_heads
    hd = ahd // H
    scale = float(hd) ** -0.5   # F.scaled_dot_product_attention default scale

    if qkv_bias_vec is None:
        qkv_bias_vec = jnp.zeros((3 * ahd,), jnp.float32)

    # ---- Wrapper-side weight prep (done once, free at trace time) ----------
    # Fused QKV weight for y = x @ W: columns ordered [Q(ahd) | K(ahd) | V(ahd)],
    # heads contiguous within each third.  SDPA scale folded into the Q columns
    # and Q bias.
    col_scale = jnp.concatenate([jnp.full((ahd,), scale, jnp.float32),
                                 jnp.ones((2 * ahd,), jnp.float32)])
    w_fused = (w_qkv.T * col_scale[None, :]).astype(compute_dtype)       # (C, 3*ahd)
    b_fused = (qkv_bias_vec.astype(jnp.float32) * col_scale).reshape(1, 3 * ahd)

    w_p = w_proj.T.astype(compute_dtype)                                 # (ahd, C)
    b_p = b_proj.reshape(1, C).astype(jnp.float32)

    # Pad the token dim to a multiple of 8 so the (bb,N,C)->(bb*N,C) flatten is
    # layout-trivial (real ViT N=197); padded key columns are masked in-kernel.
    N_pad = ((N + 7) // 8) * 8
    x_c = x.astype(compute_dtype)
    if N_pad != N:
        x_c = jnp.pad(x_c, ((0, 0), (0, N_pad - N), (0, 0)))

    bb = _pick_block_b(B, N_pad) if block_b is None else block_b
    nb = B // bb

    kernel = functools.partial(_attention_kernel, num_heads=H, valid_n=N)

    def call(weight_pipeline_mode):
        wkw = ({} if weight_pipeline_mode is None
               else {"pipeline_mode": weight_pipeline_mode})
        in_specs = [
            pl.BlockSpec((bb, N_pad, C), lambda b: (b, 0, 0)),        # x (per block)
            pl.BlockSpec((C, 3 * ahd), lambda b: (0, 0), **wkw),      # fused Wqkv
            pl.BlockSpec((1, 3 * ahd), lambda b: (0, 0), **wkw),      # fused bias (fp32)
            pl.BlockSpec((ahd, C), lambda b: (0, 0), **wkw),          # Wproj (pre-T)
            pl.BlockSpec((1, C), lambda b: (0, 0), **wkw),            # bproj (fp32)
        ]
        return pl.pallas_call(
            kernel,
            out_shape=jax.ShapeDtypeStruct((B, N_pad, C), out_dtype),
            grid=(nb,),
            in_specs=in_specs,
            out_specs=pl.BlockSpec((bb, N_pad, C), lambda b: (b, 0, 0)),
            scratch_shapes=[pltpu.VMEM((bb * N_pad, ahd), compute_dtype)],
            compiler_params=pltpu.CompilerParams(
                dimension_semantics=("parallel",),
                vmem_limit_bytes=vmem_limit_bytes),
        )(x_c, w_fused, b_fused, w_p, b_p)

    # Constant-index weights don't need double-buffering; single-buffer them
    # when the running JAX supports it (halves weight VMEM on v7x), otherwise
    # fall back to the default pipelining.
    out = None
    buffered_cls = getattr(pl, "Buffered", None)
    if buffered_cls is not None:
        try:
            out = call(buffered_cls(1))
        except Exception:
            out = None
    if out is None:
        out = call(None)

    if N_pad != N:
        out = out[:, :N, :]
    return out


def reference_forward(x, w_qkv, qkv_bias_vec, w_proj, b_proj, *, num_heads):
    """Pure-JAX fp32 reference mirroring the PyTorch forward."""
    B, N, C = x.shape
    ahd = w_qkv.shape[0] // 3
    head_dim = ahd // num_heads
    scale = float(head_dim) ** -0.5

    qkv = jnp.einsum('bnc,oc->bno', x, w_qkv) + qkv_bias_vec
    qkv = qkv.reshape(B, N, 3, num_heads, head_dim).transpose(2, 0, 3, 1, 4)
    q, k, v = qkv[0], qkv[1], qkv[2]                          # (B, H, N, hd)
    attn = jnp.einsum('bhnd,bhmd->bhnm', q, k) * scale
    attn = jax.nn.softmax(attn, axis=-1)
    o = jnp.einsum('bhnm,bhmd->bhnd', attn, v)
    o = o.transpose(0, 2, 1, 3).reshape(B, N, ahd)
    return jnp.einsum('bna,ca->bnc', o, w_proj) + b_proj


if __name__ == "__main__":
    # Small shapes consistent with the module: dim=32, num_heads=4 -> head_dim=8.
    B, N, C = 2, 8, 32
    num_heads = 4
    head_dim = C // num_heads
    all_head_dim = head_dim * num_heads

    key = jax.random.PRNGKey(0)
    k_x, k_wqkv, k_wproj, k_bproj, k_qb, k_vb = jax.random.split(key, 6)

    x = jax.random.normal(k_x, (B, N, C), dtype=jnp.float32)

    # Deterministic synthetic parameters (not a checkpoint).
    w_qkv = 0.02 * jax.random.normal(k_wqkv, (3 * all_head_dim, C), dtype=jnp.float32)
    w_proj = 0.02 * jax.random.normal(k_wproj, (C, all_head_dim), dtype=jnp.float32)
    b_proj = 0.02 * jax.random.normal(k_bproj, (C,), dtype=jnp.float32)

    # qkv_bias=True, k_bias=False path: concat(q_bias, zeros, v_bias).
    q_bias = 0.02 * jax.random.normal(k_qb, (all_head_dim,), dtype=jnp.float32)
    v_bias = 0.02 * jax.random.normal(k_vb, (all_head_dim,), dtype=jnp.float32)
    qkv_bias_vec = jnp.concatenate([q_bias, jnp.zeros_like(v_bias), v_bias])

    out = attention_forward(x, w_qkv, qkv_bias_vec, w_proj, b_proj,
                            num_heads=num_heads)
    out = jax.block_until_ready(out)

    ref = reference_forward(x, w_qkv, qkv_bias_vec, w_proj, b_proj,
                            num_heads=num_heads)
    assert out.shape == (B, N, C)
    # bf16 MXU inputs + approx reciprocal -> compare against fp32 reference
    # with a tolerance appropriate for bfloat16 compute.
    assert jnp.allclose(out, ref, atol=5e-3, rtol=5e-2), "mismatch vs JAX reference"

    print("KERNEL_OK")
</pallas_src>

<mosaic_0001>
module attributes {stable_mosaic.version = 11 : i64} {
  func.func @_attention_kernel(%arg0: i32, %arg1: memref<2x8x32xbf16, #tpu.memory_space<vmem>>, %arg2: memref<32x96xbf16, #tpu.memory_space<vmem>>, %arg3: memref<1x96xf32, #tpu.memory_space<vmem>>, %arg4: memref<32x32xbf16, #tpu.memory_space<vmem>>, %arg5: memref<1x32xf32, #tpu.memory_space<vmem>>, %arg6: memref<2x8x32xf32, #tpu.memory_space<vmem>>, %arg7: memref<16x32xbf16, #tpu.memory_space<vmem>>) attributes {dimension_semantics = [#tpu.dimension_semantics<parallel>], iteration_bounds = array<i64: 1>, scalar_prefetch = 0 : i64, scratch_operands = 1 : i64, tpu.core_type = #tpu.core_type<tc>, window_params = [{transform_indices = @transform_0, window_bounds = array<i64: 2, 8, 32>}, {pipeline_mode = #tpu.pipeline_mode<synchronous>, transform_indices = @transform_1, window_bounds = array<i64: 32, 96>}, {pipeline_mode = #tpu.pipeline_mode<synchronous>, transform_indices = @transform_2, window_bounds = array<i64: 1, 96>}, {pipeline_mode = #tpu.pipeline_mode<synchronous>, transform_indices = @transform_3, window_bounds = array<i64: 32, 32>}, {pipeline_mode = #tpu.pipeline_mode<synchronous>, transform_indices = @transform_4, window_bounds = array<i64: 1, 32>}, {transform_indices = @transform_5, window_bounds = array<i64: 2, 8, 32>}]} {
    %c0 = arith.constant 0 : index
    %c0_0 = arith.constant 0 : index
    %c0_1 = arith.constant 0 : index
    %0 = vector.load %arg1[%c0, %c0_0, %c0_1] : memref<2x8x32xbf16, #tpu.memory_space<vmem>>, vector<2x8x32xbf16>
    %1 = vector.shape_cast %0 : vector<2x8x32xbf16> to vector<16x32xbf16>
    %c0_2 = arith.constant 0 : index
    %c0_3 = arith.constant 0 : index
    %2 = vector.load %arg2[%c0_2, %c0_3] : memref<32x96xbf16, #tpu.memory_space<vmem>>, vector<32x96xbf16>
    %cst = arith.constant dense<0.000000e+00> : vector<16x96xf32>
    %3 = tpu.matmul %1, %2, %cst {dimension_numbers = #tpu.dot_dimension_numbers<[1], [0], [0], [1], [0, 0, 1, 1], [], []>} : vector<16x32xbf16>, vector<32x96xbf16>, vector<16x96xf32> -> vector<16x96xf32>
    %c0_4 = arith.constant 0 : index
    %c0_5 = arith.constant 0 : index
    %4 = vector.load %arg3[%c0_4, %c0_5] : memref<1x96xf32, #tpu.memory_space<vmem>>, vector<1x96xf32>
    %5 = vector.broadcast %4 : vector<1x96xf32> to vector<16x96xf32>
    %6 = arith.addf %3, %5 : vector<16x96xf32>
    %7 = vector.extract_strided_slice %6 {offsets = [0, 0], sizes = [16, 8], strides = [1, 1]} : vector<16x96xf32> to vector<16x8xf32>
    %8 = vector.shape_cast %7 : vector<16x8xf32> to vector<2x8x8xf32>
    %9 = arith.truncf %8 : vector<2x8x8xf32> to vector<2x8x8xbf16>
    %10 = vector.extract_strided_slice %6 {offsets = [0, 32], sizes = [16, 8], strides = [1, 1]} : vector<16x96xf32> to vector<16x8xf32>
    %11 = vector.shape_cast %10 : vector<16x8xf32> to vector<2x8x8xf32>
    %12 = arith.truncf %11 : vector<2x8x8xf32> to vector<2x8x8xbf16>
    %13 = vector.extract_strided_slice %6 {offsets = [0, 64], sizes = [16, 8], strides = [1, 1]} : vector<16x96xf32> to vector<16x8xf32>
    %14 = vector.shape_cast %13 : vector<16x8xf32> to vector<2x8x8xf32>
    %15 = arith.truncf %14 : vector<2x8x8xf32> to vector<2x8x8xbf16>
    "tpu.trace_start"() <{level = 10 : i32, message = "bnd,bmd->bnm"}> : () -> ()
    %cst_6 = arith.constant dense<0.000000e+00> : vector<2x8x8xf32>
    %16 = tpu.matmul %9, %12, %cst_6 {dimension_numbers = #tpu.dot_dimension_numbers<[2], [2], [1], [1], [0, 0, 0, 1, 1, 1], [0], [0]>} : vector<2x8x8xbf16>, vector<2x8x8xbf16>, vector<2x8x8xf32> -> vector<2x8x8xf32>
    "tpu.trace_stop"() : () -> ()
    %cst_7 = arith.constant dense<0xFF800000> : vector<2x8xf32>
    %17 = vector.multi_reduction <maximumf>, %16, %cst_7 [2] : vector<2x8x8xf32> to vector<2x8xf32>
    %18 = vector.shape_cast %17 : vector<2x8xf32> to vector<2x8x1xf32>
    %19 = vector.broadcast %18 : vector<2x8x1xf32> to vector<2x8x8xf32>
    %20 = arith.subf %16, %19 : vector<2x8x8xf32>
    %21 = math.exp %20 : vector<2x8x8xf32>
    %cst_8 = arith.constant dense<0.000000e+00> : vector<2x8xf32>
    %22 = vector.multi_reduction <add>, %21, %cst_8 [2] : vector<2x8x8xf32> to vector<2x8xf32>
    %23 = vector.shape_cast %22 : vector<2x8xf32> to vector<2x8x1xf32>
    %24 = tpu.reciprocal %23 {approx = true} : vector<2x8x1xf32> -> vector<2x8x1xf32>
    %25 = vector.broadcast %24 : vector<2x8x1xf32> to vector<2x8x8xf32>
    %26 = arith.mulf %21, %25 : vector<2x8x8xf32>
    %27 = arith.truncf %26 : vector<2x8x8xf32> to vector<2x8x8xbf16>
    "tpu.trace_start"() <{level = 10 : i32, message = "bnm,bmd->bnd"}> : () -> ()
    %cst_9 = arith.constant dense<0.000000e+00> : vector<2x8x8xf32>
    %28 = tpu.matmul %27, %15, %cst_9 {dimension_numbers = #tpu.dot_dimension_numbers<[2], [1], [1], [2], [0, 0, 0, 1, 1, 2], [0], [0]>} : vector<2x8x8xbf16>, vector<2x8x8xbf16>, vector<2x8x8xf32> -> vector<2x8x8xf32>
    "tpu.trace_stop"() : () -> ()
    %29 = vector.shape_cast %28 : vector<2x8x8xf32> to vector<16x8xf32>
    %30 = arith.truncf %29 : vector<16x8xf32> to vector<16x8xbf16>
    %c0_10 = arith.constant 0 : index
    %c0_11 = arith.constant 0 : index
    %31 = vector.load %arg7[%c0_10, %c0_11] : memref<16x32xbf16, #tpu.memory_space<vmem>>, vector<16x8xbf16>
    tpu.vector_store %arg7[%c0_10, %c0_11], %30 {strides = array<i32>} : memref<16x32xbf16, #tpu.memory_space<vmem>>, vector<16x8xbf16>,
    %32 = vector.extract_strided_slice %6 {offsets = [0, 8], sizes = [16, 8], strides = [1, 1]} : vector<16x96xf32> to vector<16x8xf32>
    %33 = vector.shape_cast %32 : vector<16x8xf32> to vector<2x8x8xf32>
    %34 = arith.truncf %33 : vector<2x8x8xf32> to vector<2x8x8xbf16>
    %35 = vector.extract_strided_slice %6 {offsets = [0, 40], sizes = [16, 8], strides = [1, 1]} : vector<16x96xf32> to vector<16x8xf32>
    %36 = vector.shape_cast %35 : vector<16x8xf32> to vector<2x8x8xf32>
    %37 = arith.truncf %36 : vector<2x8x8xf32> to vector<2x8x8xbf16>
    %38 = vector.extract_strided_slice %6 {offsets = [0, 72], sizes = [16, 8], strides = [1, 1]} : vector<16x96xf32> to vector<16x8xf32>
    %39 = vector.shape_cast %38 : vector<16x8xf32> to vector<2x8x8xf32>
    %40 = arith.truncf %39 : vector<2x8x8xf32> to vector<2x8x8xbf16>
    "tpu.trace_start"() <{level = 10 : i32, message = "bnd,bmd->bnm"}> : () -> ()
    %cst_12 = arith.constant dense<0.000000e+00> : vector<2x8x8xf32>
    %41 = tpu.matmul %34, %37, %cst_12 {dimension_numbers = #tpu.dot_dimension_numbers<[2], [2], [1], [1], [0, 0, 0, 1, 1, 1], [0], [0]>} : vector<2x8x8xbf16>, vector<2x8x8xbf16>, vector<2x8x8xf32> -> vector<2x8x8xf32>
    "tpu.trace_stop"() : () -> ()
    %cst_13 = arith.constant dense<0xFF800000> : vector<2x8xf32>
    %42 = vector.multi_reduction <maximumf>, %41, %cst_13 [2] : vector<2x8x8xf32> to vector<2x8xf32>
    %43 = vector.shape_cast %42 : vector<2x8xf32> to vector<2x8x1xf32>
    %44 = vector.broadcast %43 : vector<2x8x1xf32> to vector<2x8x8xf32>
    %45 = arith.subf %41, %44 : vector<2x8x8xf32>
    %46 = math.exp %45 : vector<2x8x8xf32>
    %cst_14 = arith.constant dense<0.000000e+00> : vector<2x8xf32>
    %47 = vector.multi_reduction <add>, %46, %cst_14 [2] : vector<2x8x8xf32> to vector<2x8xf32>
    %48 = vector.shape_cast %47 : vector<2x8xf32> to vector<2x8x1xf32>
    %49 = tpu.reciprocal %48 {approx = true} : vector<2x8x1xf32> -> vector<2x8x1xf32>
    %50 = vector.broadcast %49 : vector<2x8x1xf32> to vector<2x8x8xf32>
    %51 = arith.mulf %46, %50 : vector<2x8x8xf32>
    %52 = arith.truncf %51 : vector<2x8x8xf32> to vector<2x8x8xbf16>
    "tpu.trace_start"() <{level = 10 : i32, message = "bnm,bmd->bnd"}> : () -> ()
    %cst_15 = arith.constant dense<0.000000e+00> : vector<2x8x8xf32>
    %53 = tpu.matmul %52, %40, %cst_15 {dimension_numbers = #tpu.dot_dimension_numbers<[2], [1], [1], [2], [0, 0, 0, 1, 1, 2], [0], [0]>} : vector<2x8x8xbf16>, vector<2x8x8xbf16>, vector<2x8x8xf32> -> vector<2x8x8xf32>
    "tpu.trace_stop"() : () -> ()
    %54 = vector.shape_cast %53 : vector<2x8x8xf32> to vector<16x8xf32>
    %55 = arith.truncf %54 : vector<16x8xf32> to vector<16x8xbf16>
    %c0_16 = arith.constant 0 : index
    %c8 = arith.constant 8 : index
    %56 = vector.load %arg7[%c0_16, %c8] : memref<16x32xbf16, #tpu.memory_space<vmem>>, vector<16x8xbf16>
    tpu.vector_store %arg7[%c0_16, %c8], %55 {strides = array<i32>} : memref<16x32xbf16, #tpu.memory_space<vmem>>, vector<16x8xbf16>,
    %57 = vector.extract_strided_slice %6 {offsets = [0, 16], sizes = [16, 8], strides = [1, 1]} : vector<16x96xf32> to vector<16x8xf32>
    %58 = vector.shape_cast %57 : vector<16x8xf32> to vector<2x8x8xf32>
    %59 = arith.truncf %58 : vector<2x8x8xf32> to vector<2x8x8xbf16>
    %60 = vector.extract_strided_slice %6 {offsets = [0, 48], sizes = [16, 8], strides = [1, 1]} : vector<16x96xf32> to vector<16x8xf32>
    %61 = vector.shape_cast %60 : vector<16x8xf32> to vector<2x8x8xf32>
    %62 = arith.truncf %61 : vector<2x8x8xf32> to vector<2x8x8xbf16>
    %63 = vector.extract_strided_slice %6 {offsets = [0, 80], sizes = [16, 8], strides = [1, 1]} : vector<16x96xf32> to vector<16x8xf32>
    %64 = vector.shape_cast %63 : vector<16x8xf32> to vector<2x8x8xf32>
    %65 = arith.truncf %64 : vector<2x8x8xf32> to vector<2x8x8xbf16>
    "tpu.trace_start"() <{level = 10 : i32, message = "bnd,bmd->bnm"}> : () -> ()
    %cst_17 = arith.constant dense<0.000000e+00> : vector<2x8x8xf32>
    %66 = tpu.matmul %59, %62, %cst_17 {dimension_numbers = #tpu.dot_dimension_numbers<[2], [2], [1], [1], [0, 0, 0, 1, 1, 1], [0], [0]>} : vector<2x8x8xbf16>, vector<2x8x8xbf16>, vector<2x8x8xf32> -> vector<2x8x8xf32>
    "tpu.trace_stop"() : () -> ()
    %cst_18 = arith.constant dense<0xFF800000> : vector<2x8xf32>
    %67 = vector.multi_reduction <maximumf>, %66, %cst_18 [2] : vector<2x8x8xf32> to vector<2x8xf32>
    %68 = vector.shape_cast %67 : vector<2x8xf32> to vector<2x8x1xf32>
    %69 = vector.broadcast %68 : vector<2x8x1xf32> to vector<2x8x8xf32>
    %70 = arith.subf %66, %69 : vector<2x8x8xf32>
    %71 = math.exp %70 : vector<2x8x8xf32>
    %cst_19 = arith.constant dense<0.000000e+00> : vector<2x8xf32>
    %72 = vector.multi_reduction <add>, %71, %cst_19 [2] : vector<2x8x8xf32> to vector<2x8xf32>
    %73 = vector.shape_cast %72 : vector<2x8xf32> to vector<2x8x1xf32>
    %74 = tpu.reciprocal %73 {approx = true} : vector<2x8x1xf32> -> vector<2x8x1xf32>
    %75 = vector.broadcast %74 : vector<2x8x1xf32> to vector<2x8x8xf32>
    %76 = arith.mulf %71, %75 : vector<2x8x8xf32>
    %77 = arith.truncf %76 : vector<2x8x8xf32> to vector<2x8x8xbf16>
    "tpu.trace_start"() <{level = 10 : i32, message = "bnm,bmd->bnd"}> : () -> ()
    %cst_20 = arith.constant dense<0.000000e+00> : vector<2x8x8xf32>
    %78 = tpu.matmul %77, %65, %cst_20 {dimension_numbers = #tpu.dot_dimension_numbers<[2], [1], [1], [2], [0, 0, 0, 1, 1, 2], [0], [0]>} : vector<2x8x8xbf16>, vector<2x8x8xbf16>, vector<2x8x8xf32> -> vector<2x8x8xf32>
    "tpu.trace_stop"() : () -> ()
    %79 = vector.shape_cast %78 : vector<2x8x8xf32> to vector<16x8xf32>
    %80 = arith.truncf %79 : vector<16x8xf32> to vector<16x8xbf16>
    %c0_21 = arith.constant 0 : index
    %c16 = arith.constant 16 : index
    %81 = vector.load %arg7[%c0_21, %c16] : memref<16x32xbf16, #tpu.memory_space<vmem>>, vector<16x8xbf16>
    tpu.vector_store %arg7[%c0_21, %c16], %80 {strides = array<i32>} : memref<16x32xbf16, #tpu.memory_space<vmem>>, vector<16x8xbf16>,
    %82 = vector.extract_strided_slice %6 {offsets = [0, 24], sizes = [16, 8], strides = [1, 1]} : vector<16x96xf32> to vector<16x8xf32>
    %83 = vector.shape_cast %82 : vector<16x8xf32> to vector<2x8x8xf32>
    %84 = arith.truncf %83 : vector<2x8x8xf32> to vector<2x8x8xbf16>
    %85 = vector.extract_strided_slice %6 {offsets = [0, 56], sizes = [16, 8], strides = [1, 1]} : vector<16x96xf32> to vector<16x8xf32>
    %86 = vector.shape_cast %85 : vector<16x8xf32> to vector<2x8x8xf32>
    %87 = arith.truncf %86 : vector<2x8x8xf32> to vector<2x8x8xbf16>
    %88 = vector.extract_strided_slice %6 {offsets = [0, 88], sizes = [16, 8], strides = [1, 1]} : vector<16x96xf32> to vector<16x8xf32>
    %89 = vector.shape_cast %88 : vector<16x8xf32> to vector<2x8x8xf32>
    %90 = arith.truncf %89 : vector<2x8x8xf32> to vector<2x8x8xbf16>
    "tpu.trace_start"() <{level = 10 : i32, message = "bnd,bmd->bnm"}> : () -> ()
    %cst_22 = arith.constant dense<0.000000e+00> : vector<2x8x8xf32>
    %91 = tpu.matmul %84, %87, %cst_22 {dimension_numbers = #tpu.dot_dimension_numbers<[2], [2], [1], [1], [0, 0, 0, 1, 1, 1], [0], [0]>} : vector<2x8x8xbf16>, vector<2x8x8xbf16>, vector<2x8x8xf32> -> vector<2x8x8xf32>
    "tpu.trace_stop"() : () -> ()
    %cst_23 = arith.constant dense<0xFF800000> : vector<2x8xf32>
    %92 = vector.multi_reduction <maximumf>, %91, %cst_23 [2] : vector<2x8x8xf32> to vector<2x8xf32>
    %93 = vector.shape_cast %92 : vector<2x8xf32> to vector<2x8x1xf32>
    %94 = vector.broadcast %93 : vector<2x8x1xf32> to vector<2x8x8xf32>
    %95 = arith.subf %91, %94 : vector<2x8x8xf32>
    %96 = math.exp %95 : vector<2x8x8xf32>
    %cst_24 = arith.constant dense<0.000000e+00> : vector<2x8xf32>
    %97 = vector.multi_reduction <add>, %96, %cst_24 [2] : vector<2x8x8xf32> to vector<2x8xf32>
    %98 = vector.shape_cast %97 : vector<2x8xf32> to vector<2x8x1xf32>
    %99 = tpu.reciprocal %98 {approx = true} : vector<2x8x1xf32> -> vector<2x8x1xf32>
    %100 = vector.broadcast %99 : vector<2x8x1xf32> to vector<2x8x8xf32>
    %101 = arith.mulf %96, %100 : vector<2x8x8xf32>
    %102 = arith.truncf %101 : vector<2x8x8xf32> to vector<2x8x8xbf16>
    "tpu.trace_start"() <{level = 10 : i32, message = "bnm,bmd->bnd"}> : () -> ()
    %cst_25 = arith.constant dense<0.000000e+00> : vector<2x8x8xf32>
    %103 = tpu.matmul %102, %90, %cst_25 {dimension_numbers = #tpu.dot_dimension_numbers<[2], [1], [1], [2], [0, 0, 0, 1, 1, 2], [0], [0]>} : vector<2x8x8xbf16>, vector<2x8x8xbf16>, vector<2x8x8xf32> -> vector<2x8x8xf32>
    "tpu.trace_stop"() : () -> ()
    %104 = vector.shape_cast %103 : vector<2x8x8xf32> to vector<16x8xf32>
    %105 = arith.truncf %104 : vector<16x8xf32> to vector<16x8xbf16>
    %c0_26 = arith.constant 0 : index
    %c24 = arith.constant 24 : index
    %106 = vector.load %arg7[%c0_26, %c24] : memref<16x32xbf16, #tpu.memory_space<vmem>>, vector<16x8xbf16>
    tpu.vector_store %arg7[%c0_26, %c24], %105 {strides = array<i32>} : memref<16x32xbf16, #tpu.memory_space<vmem>>, vector<16x8xbf16>,
    %c0_27 = arith.constant 0 : index
    %c0_28 = arith.constant 0 : index
    %107 = vector.load %arg7[%c0_27, %c0_28] : memref<16x32xbf16, #tpu.memory_space<vmem>>, vector<16x32xbf16>
    %c0_29 = arith.constant 0 : index
    %c0_30 = arith.constant 0 : index
    %108 = vector.load %arg4[%c0_29, %c0_30] : memref<32x32xbf16, #tpu.memory_space<vmem>>, vector<32x32xbf16>
    %cst_31 = arith.constant dense<0.000000e+00> : vector<16x32xf32>
    %109 = tpu.matmul %107, %108, %cst_31 {dimension_numbers = #tpu.dot_dimension_numbers<[1], [0], [0], [1], [0, 0, 1, 1], [], []>} : vector<16x32xbf16>, vector<32x32xbf16>, vector<16x32xf32> -> vector<16x32xf32>
    %c0_32 = arith.constant 0 : index
    %c0_33 = arith.constant 0 : index
    %110 = vector.load %arg5[%c0_32, %c0_33] : memref<1x32xf32, #tpu.memory_space<vmem>>, vector<1x32xf32>
    %111 = vector.broadcast %110 : vector<1x32xf32> to vector<16x32xf32>
    %112 = arith.addf %109, %111 : vector<16x32xf32>
    %113 = vector.shape_cast %112 : vector<16x32xf32> to vector<2x8x32xf32>
    %c0_34 = arith.constant 0 : index
    %c0_35 = arith.constant 0 : index
    %c0_36 = arith.constant 0 : index
    %114 = vector.load %arg6[%c0_34, %c0_35, %c0_36] : memref<2x8x32xf32, #tpu.memory_space<vmem>>, vector<2x8x32xf32>
    tpu.vector_store %arg6[%c0_34, %c0_35, %c0_36], %113 {strides = array<i32>} : memref<2x8x32xf32, #tpu.memory_space<vmem>>, vector<2x8x32xf32>,
    return
  }
  func.func @transform_0(%arg0: i32) -> (i32, i32, i32) {
    %c0_i32 = arith.constant 0 : i32
    %c0_i32_0 = arith.constant 0 : i32
    %c0_i32_1 = arith.constant 0 : i32
    return %arg0, %c0_i32, %c0_i32_0 : i32, i32, i32
  }
  func.func @transform_1(%arg0: i32) -> (i32, i32) {
    %c0_i32 = arith.constant 0 : i32
    %c0_i32_0 = arith.constant 0 : i32
    %c0_i32_1 = arith.constant 0 : i32
    return %c0_i32, %c0_i32_0 : i32, i32
  }
  func.func @transform_2(%arg0: i32) -> (i32, i32) {
    %c0_i32 = arith.constant 0 : i32
    %c0_i32_0 = arith.constant 0 : i32
    %c0_i32_1 = arith.constant 0 : i32
    return %c0_i32, %c0_i32_0 : i32, i32
  }
  func.func @transform_3(%arg0: i32) -> (i32, i32) {
    %c0_i32 = arith.constant 0 : i32
    %c0_i32_0 = arith.constant 0 : i32
    %c0_i32_1 = arith.constant 0 : i32
    return %c0_i32, %c0_i32_0 : i32, i32
  }
  func.func @transform_4(%arg0: i32) -> (i32, i32) {
    %c0_i32 = arith.constant 0 : i32
    %c0_i32_0 = arith.constant 0 : i32
    %c0_i32_1 = arith.constant 0 : i32
    return %c0_i32, %c0_i32_0 : i32, i32
  }
  func.func @transform_5(%arg0: i32) -> (i32, i32, i32) {
    %c0_i32 = arith.constant 0 : i32
    %c0_i32_0 = arith.constant 0 : i32
    %c0_i32_1 = arith.constant 0 : i32
    return %arg0, %c0_i32, %c0_i32_0 : i32, i32, i32
  }
}

module attributes {stable_mosaic.version = 11 : i64} {
  func.func @_attention_kernel(%arg0: i32, %arg1: memref<2x8x32xbf16, #tpu.memory_space<vmem>>, %arg2: memref<32x96xbf16, #tpu.memory_space<vmem>>, %arg3: memref<1x96xf32, #tpu.memory_space<vmem>>, %arg4: memref<32x32xbf16, #tpu.memory_space<vmem>>, %arg5: memref<1x32xf32, #tpu.memory_space<vmem>>, %arg6: memref<2x8x32xf32, #tpu.memory_space<vmem>>, %arg7: memref<16x32xbf16, #tpu.memory_space<vmem>>) attributes {dimension_semantics = [#tpu.dimension_semantics<parallel>], iteration_bounds = array<i64: 1>, scalar_prefetch = 0 : i64, scratch_operands = 1 : i64, tpu.core_type = #tpu.core_type<tc>, window_params = [{transform_indices = @transform_0, window_bounds = array<i64: 2, 8, 32>}, {pipeline_mode = #tpu.pipeline_mode<synchronous>, transform_indices = @transform_1, window_bounds = array<i64: 32, 96>}, {pipeline_mode = #tpu.pipeline_mode<synchronous>, transform_indices = @transform_2, window_bounds = array<i64: 1, 96>}, {pipeline_mode = #tpu.pipeline_mode<synchronous>, transform_indices = @transform_3, window_bounds = array<i64: 32, 32>}, {pipeline_mode = #tpu.pipeline_mode<synchronous>, transform_indices = @transform_4, window_bounds = array<i64: 1, 32>}, {transform_indices = @transform_5, window_bounds = array<i64: 2, 8, 32>}]} {
    %c0 = arith.constant 0 : index
    %c0_0 = arith.constant 0 : index
    %c0_1 = arith.constant 0 : index
    %0 = vector.load %arg1[%c0, %c0_0, %c0_1] : memref<2x8x32xbf16, #tpu.memory_space<vmem>>, vector<2x8x32xbf16>
    %1 = vector.shape_cast %0 : vector<2x8x32xbf16> to vector<16x32xbf16>
    %c0_2 = arith.constant 0 : index
    %c0_3 = arith.constant 0 : index
    %2 = vector.load %arg2[%c0_2, %c0_3] : memref<32x96xbf16, #tpu.memory_space<vmem>>, vector<32x96xbf16>
    %cst = arith.constant dense<0.000000e+00> : vector<16x96xf32>
    %3 = tpu.matmul %1, %2, %cst {dimension_numbers = #tpu.dot_dimension_numbers<[1], [0], [0], [1], [0, 0, 1, 1], [], []>} : vector<16x32xbf16>, vector<32x96xbf16>, vector<16x96xf32> -> vector<16x96xf32>
    %c0_4 = arith.constant 0 : index
    %c0_5 = arith.constant 0 : index
    %4 = vector.load %arg3[%c0_4, %c0_5] : memref<1x96xf32, #tpu.memory_space<vmem>>, vector<1x96xf32>
    %5 = vector.broadcast %4 : vector<1x96xf32> to vector<16x96xf32>
    %6 = arith.addf %3, %5 : vector<16x96xf32>
    %7 = vector.extract_strided_slice %6 {offsets = [0, 0], sizes = [16, 8], strides = [1, 1]} : vector<16x96xf32> to vector<16x8xf32>
    %8 = vector.shape_cast %7 : vector<16x8xf32> to vector<2x8x8xf32>
    %9 = arith.truncf %8 : vector<2x8x8xf32> to vector<2x8x8xbf16>
    %10 = vector.extract_strided_slice %6 {offsets = [0, 32], sizes = [16, 8], strides = [1, 1]} : vector<16x96xf32> to vector<16x8xf32>
    %11 = vector.shape_cast %10 : vector<16x8xf32> to vector<2x8x8xf32>
    %12 = arith.truncf %11 : vector<2x8x8xf32> to vector<2x8x8xbf16>
    %13 = vector.extract_strided_slice %6 {offsets = [0, 64], sizes = [16, 8], strides = [1, 1]} : vector<16x96xf32> to vector<16x8xf32>
    %14 = vector.shape_cast %13 : vector<16x8xf32> to vector<2x8x8xf32>
    %15 = arith.truncf %14 : vector<2x8x8xf32> to vector<2x8x8xbf16>
    "tpu.trace_start"() <{level = 10 : i32, message = "bnd,bmd->bnm"}> : () -> ()
    %cst_6 = arith.constant dense<0.000000e+00> : vector<2x8x8xf32>
    %16 = tpu.matmul %9, %12, %cst_6 {dimension_numbers = #tpu.dot_dimension_numbers<[2], [2], [1], [1], [0, 0, 0, 1, 1, 1], [0], [0]>} : vector<2x8x8xbf16>, vector<2x8x8xbf16>, vector<2x8x8xf32> -> vector<2x8x8xf32>
    "tpu.trace_stop"() : () -> ()
    %cst_7 = arith.constant dense<0xFF800000> : vector<2x8xf32>
    %17 = vector.multi_reduction <maximumf>, %16, %cst_7 [2] : vector<2x8x8xf32> to vector<2x8xf32>
    %18 = vector.shape_cast %17 : vector<2x8xf32> to vector<2x8x1xf32>
    %19 = vector.broadcast %18 : vector<2x8x1xf32> to vector<2x8x8xf32>
    %20 = arith.subf %16, %19 : vector<2x8x8xf32>
    %21 = math.exp %20 : vector<2x8x8xf32>
    %cst_8 = arith.constant dense<0.000000e+00> : vector<2x8xf32>
    %22 = vector.multi_reduction <add>, %21, %cst_8 [2] : vector<2x8x8xf32> to vector<2x8xf32>
    %23 = vector.shape_cast %22 : vector<2x8xf32> to vector<2x8x1xf32>
    %24 = tpu.reciprocal %23 {approx = true} : vector<2x8x1xf32> -> vector<2x8x1xf32>
    %25 = vector.broadcast %24 : vector<2x8x1xf32> to vector<2x8x8xf32>
    %26 = arith.mulf %21, %25 : vector<2x8x8xf32>
    %27 = arith.truncf %26 : vector<2x8x8xf32> to vector<2x8x8xbf16>
    "tpu.trace_start"() <{level = 10 : i32, message = "bnm,bmd->bnd"}> : () -> ()
    %cst_9 = arith.constant dense<0.000000e+00> : vector<2x8x8xf32>
    %28 = tpu.matmul %27, %15, %cst_9 {dimension_numbers = #tpu.dot_dimension_numbers<[2], [1], [1], [2], [0, 0, 0, 1, 1, 2], [0], [0]>} : vector<2x8x8xbf16>, vector<2x8x8xbf16>, vector<2x8x8xf32> -> vector<2x8x8xf32>
    "tpu.trace_stop"() : () -> ()
    %29 = vector.shape_cast %28 : vector<2x8x8xf32> to vector<16x8xf32>
    %30 = arith.truncf %29 : vector<16x8xf32> to vector<16x8xbf16>
    %c0_10 = arith.constant 0 : index
    %c0_11 = arith.constant 0 : index
    %31 = vector.load %arg7[%c0_10, %c0_11] : memref<16x32xbf16, #tpu.memory_space<vmem>>, vector<16x8xbf16>
    tpu.vector_store %arg7[%c0_10, %c0_11], %30 {strides = array<i32>} : memref<16x32xbf16, #tpu.memory_space<vmem>>, vector<16x8xbf16>,
    %32 = vector.extract_strided_slice %6 {offsets = [0, 8], sizes = [16, 8], strides = [1, 1]} : vector<16x96xf32> to vector<16x8xf32>
    %33 = vector.shape_cast %32 : vector<16x8xf32> to vector<2x8x8xf32>
    %34 = arith.truncf %33 : vector<2x8x8xf32> to vector<2x8x8xbf16>
    %35 = vector.extract_strided_slice %6 {offsets = [0, 40], sizes = [16, 8], strides = [1, 1]} : vector<16x96xf32> to vector<16x8xf32>
    %36 = vector.shape_cast %35 : vector<16x8xf32> to vector<2x8x8xf32>
    %37 = arith.truncf %36 : vector<2x8x8xf32> to vector<2x8x8xbf16>
    %38 = vector.extract_strided_slice %6 {offsets = [0, 72], sizes = [16, 8], strides = [1, 1]} : vector<16x96xf32> to vector<16x8xf32>
    %39 = vector.shape_cast %38 : vector<16x8xf32> to vector<2x8x8xf32>
    %40 = arith.truncf %39 : vector<2x8x8xf32> to vector<2x8x8xbf16>
    "tpu.trace_start"() <{level = 10 : i32, message = "bnd,bmd->bnm"}> : () -> ()
    %cst_12 = arith.constant dense<0.000000e+00> : vector<2x8x8xf32>
    %41 = tpu.matmul %34, %37, %cst_12 {dimension_numbers = #tpu.dot_dimension_numbers<[2], [2], [1], [1], [0, 0, 0, 1, 1, 1], [0], [0]>} : vector<2x8x8xbf16>, vector<2x8x8xbf16>, vector<2x8x8xf32> -> vector<2x8x8xf32>
    "tpu.trace_stop"() : () -> ()
    %cst_13 = arith.constant dense<0xFF800000> : vector<2x8xf32>
    %42 = vector.multi_reduction <maximumf>, %41, %cst_13 [2] : vector<2x8x8xf32> to vector<2x8xf32>
    %43 = vector.shape_cast %42 : vector<2x8xf32> to vector<2x8x1xf32>
    %44 = vector.broadcast %43 : vector<2x8x1xf32> to vector<2x8x8xf32>
    %45 = arith.subf %41, %44 : vector<2x8x8xf32>
    %46 = math.exp %45 : vector<2x8x8xf32>
    %cst_14 = arith.constant dense<0.000000e+00> : vector<2x8xf32>
    %47 = vector.multi_reduction <add>, %46, %cst_14 [2] : vector<2x8x8xf32> to vector<2x8xf32>
    %48 = vector.shape_cast %47 : vector<2x8xf32> to vector<2x8x1xf32>
    %49 = tpu.reciprocal %48 {approx = true} : vector<2x8x1xf32> -> vector<2x8x1xf32>
    %50 = vector.broadcast %49 : vector<2x8x1xf32> to vector<2x8x8xf32>
    %51 = arith.mulf %46, %50 : vector<2x8x8xf32>
    %52 = arith.truncf %51 : vector<2x8x8xf32> to vector<2x8x8xbf16>
    "tpu.trace_start"() <{level = 10 : i32, message = "bnm,bmd->bnd"}> : () -> ()
    %cst_15 = arith.constant dense<0.000000e+00> : vector<2x8x8xf32>
    %53 = tpu.matmul %52, %40, %cst_15 {dimension_numbers = #tpu.dot_dimension_numbers<[2], [1], [1], [2], [0, 0, 0, 1, 1, 2], [0], [0]>} : vector<2x8x8xbf16>, vector<2x8x8xbf16>, vector<2x8x8xf32> -> vector<2x8x8xf32>
    "tpu.trace_stop"() : () -> ()
    %54 = vector.shape_cast %53 : vector<2x8x8xf32> to vector<16x8xf32>
    %55 = arith.truncf %54 : vector<16x8xf32> to vector<16x8xbf16>
    %c0_16 = arith.constant 0 : index
    %c8 = arith.constant 8 : index
    %56 = vector.load %arg7[%c0_16, %c8] : memref<16x32xbf16, #tpu.memory_space<vmem>>, vector<16x8xbf16>
    tpu.vector_store %arg7[%c0_16, %c8], %55 {strides = array<i32>} : memref<16x32xbf16, #tpu.memory_space<vmem>>, vector<16x8xbf16>,
    %57 = vector.extract_strided_slice %6 {offsets = [0, 16], sizes = [16, 8], strides = [1, 1]} : vector<16x96xf32> to vector<16x8xf32>
    %58 = vector.shape_cast %57 : vector<16x8xf32> to vector<2x8x8xf32>
    %59 = arith.truncf %58 : vector<2x8x8xf32> to vector<2x8x8xbf16>
    %60 = vector.extract_strided_slice %6 {offsets = [0, 48], sizes = [16, 8], strides = [1, 1]} : vector<16x96xf32> to vector<16x8xf32>
    %61 = vector.shape_cast %60 : vector<16x8xf32> to vector<2x8x8xf32>
    %62 = arith.truncf %61 : vector<2x8x8xf32> to vector<2x8x8xbf16>
    %63 = vector.extract_strided_slice %6 {offsets = [0, 80], sizes = [16, 8], strides = [1, 1]} : vector<16x96xf32> to vector<16x8xf32>
    %64 = vector.shape_cast %63 : vector<16x8xf32> to vector<2x8x8xf32>
    %65 = arith.truncf %64 : vector<2x8x8xf32> to vector<2x8x8xbf16>
    "tpu.trace_start"() <{level = 10 : i32, message = "bnd,bmd->bnm"}> : () -> ()
    %cst_17 = arith.constant dense<0.000000e+00> : vector<2x8x8xf32>
    %66 = tpu.matmul %59, %62, %cst_17 {dimension_numbers = #tpu.dot_dimension_numbers<[2], [2], [1], [1], [0, 0, 0, 1, 1, 1], [0], [0]>} : vector<2x8x8xbf16>, vector<2x8x8xbf16>, vector<2x8x8xf32> -> vector<2x8x8xf32>
    "tpu.trace_stop"() : () -> ()
    %cst_18 = arith.constant dense<0xFF800000> : vector<2x8xf32>
    %67 = vector.multi_reduction <maximumf>, %66, %cst_18 [2] : vector<2x8x8xf32> to vector<2x8xf32>
    %68 = vector.shape_cast %67 : vector<2x8xf32> to vector<2x8x1xf32>
    %69 = vector.broadcast %68 : vector<2x8x1xf32> to vector<2x8x8xf32>
    %70 = arith.subf %66, %69 : vector<2x8x8xf32>
    %71 = math.exp %70 : vector<2x8x8xf32>
    %cst_19 = arith.constant dense<0.000000e+00> : vector<2x8xf32>
    %72 = vector.multi_reduction <add>, %71, %cst_19 [2] : vector<2x8x8xf32> to vector<2x8xf32>
    %73 = vector.shape_cast %72 : vector<2x8xf32> to vector<2x8x1xf32>
    %74 = tpu.reciprocal %73 {approx = true} : vector<2x8x1xf32> -> vector<2x8x1xf32>
    %75 = vector.broadcast %74 : vector<2x8x1xf32> to vector<2x8x8xf32>
    %76 = arith.mulf %71, %75 : vector<2x8x8xf32>
    %77 = arith.truncf %76 : vector<2x8x8xf32> to vector<2x8x8xbf16>
    "tpu.trace_start"() <{level = 10 : i32, message = "bnm,bmd->bnd"}> : () -> ()
    %cst_20 = arith.constant dense<0.000000e+00> : vector<2x8x8xf32>
    %78 = tpu.matmul %77, %65, %cst_20 {dimension_numbers = #tpu.dot_dimension_numbers<[2], [1], [1], [2], [0, 0, 0, 1, 1, 2], [0], [0]>} : vector<2x8x8xbf16>, vector<2x8x8xbf16>, vector<2x8x8xf32> -> vector<2x8x8xf32>
    "tpu.trace_stop"() : () -> ()
    %79 = vector.shape_cast %78 : vector<2x8x8xf32> to vector<16x8xf32>
    %80 = arith.truncf %79 : vector<16x8xf32> to vector<16x8xbf16>
    %c0_21 = arith.constant 0 : index
    %c16 = arith.constant 16 : index
    %81 = vector.load %arg7[%c0_21, %c16] : memref<16x32xbf16, #tpu.memory_space<vmem>>, vector<16x8xbf16>
    tpu.vector_store %arg7[%c0_21, %c16], %80 {strides = array<i32>} : memref<16x32xbf16, #tpu.memory_space<vmem>>, vector<16x8xbf16>,
    %82 = vector.extract_strided_slice %6 {offsets = [0, 24], sizes = [16, 8], strides = [1, 1]} : vector<16x96xf32> to vector<16x8xf32>
    %83 = vector.shape_cast %82 : vector<16x8xf32> to vector<2x8x8xf32>
    %84 = arith.truncf %83 : vector<2x8x8xf32> to vector<2x8x8xbf16>
    %85 = vector.extract_strided_slice %6 {offsets = [0, 56], sizes = [16, 8], strides = [1, 1]} : vector<16x96xf32> to vector<16x8xf32>
    %86 = vector.shape_cast %85 : vector<16x8xf32> to vector<2x8x8xf32>
    %87 = arith.truncf %86 : vector<2x8x8xf32> to vector<2x8x8xbf16>
    %88 = vector.extract_strided_slice %6 {offsets = [0, 88], sizes = [16, 8], strides = [1, 1]} : vector<16x96xf32> to vector<16x8xf32>
    %89 = vector.shape_cast %88 : vector<16x8xf32> to vector<2x8x8xf32>
    %90 = arith.truncf %89 : vector<2x8x8xf32> to vector<2x8x8xbf16>
    "tpu.trace_start"() <{level = 10 : i32, message = "bnd,bmd->bnm"}> : () -> ()
    %cst_22 = arith.constant dense<0.000000e+00> : vector<2x8x8xf32>
    %91 = tpu.matmul %84, %87, %cst_22 {dimension_numbers = #tpu.dot_dimension_numbers<[2], [2], [1], [1], [0, 0, 0, 1, 1, 1], [0], [0]>} : vector<2x8x8xbf16>, vector<2x8x8xbf16>, vector<2x8x8xf32> -> vector<2x8x8xf32>
    "tpu.trace_stop"() : () -> ()
    %cst_23 = arith.constant dense<0xFF800000> : vector<2x8xf32>
    %92 = vector.multi_reduction <maximumf>, %91, %cst_23 [2] : vector<2x8x8xf32> to vector<2x8xf32>
    %93 = vector.shape_cast %92 : vector<2x8xf32> to vector<2x8x1xf32>
    %94 = vector.broadcast %93 : vector<2x8x1xf32> to vector<2x8x8xf32>
    %95 = arith.subf %91, %94 : vector<2x8x8xf32>
    %96 = math.exp %95 : vector<2x8x8xf32>
    %cst_24 = arith.constant dense<0.000000e+00> : vector<2x8xf32>
    %97 = vector.multi_reduction <add>, %96, %cst_24 [2] : vector<2x8x8xf32> to vector<2x8xf32>
    %98 = vector.shape_cast %97 : vector<2x8xf32> to vector<2x8x1xf32>
    %99 = tpu.reciprocal %98 {approx = true} : vector<2x8x1xf32> -> vector<2x8x1xf32>
    %100 = vector.broadcast %99 : vector<2x8x1xf32> to vector<2x8x8xf32>
    %101 = arith.mulf %96, %100 : vector<2x8x8xf32>
    %102 = arith.truncf %101 : vector<2x8x8xf32> to vector<2x8x8xbf16>
    "tpu.trace_start"() <{level = 10 : i32, message = "bnm,bmd->bnd"}> : () -> ()
    %cst_25 = arith.constant dense<0.000000e+00> : vector<2x8x8xf32>
    %103 = tpu.matmul %102, %90, %cst_25 {dimension_numbers = #tpu.dot_dimension_numbers<[2], [1], [1], [2], [0, 0, 0, 1, 1, 2], [0], [0]>} : vector<2x8x8xbf16>, vector<2x8x8xbf16>, vector<2x8x8xf32> -> vector<2x8x8xf32>
    "tpu.trace_stop"() : () -> ()
    %104 = vector.shape_cast %103 : vector<2x8x8xf32> to vector<16x8xf32>
    %105 = arith.truncf %104 : vector<16x8xf32> to vector<16x8xbf16>
    %c0_26 = arith.constant 0 : index
    %c24 = arith.constant 24 : index
    %106 = vector.load %arg7[%c0_26, %c24] : memref<16x32xbf16, #tpu.memory_space<vmem>>, vector<16x8xbf16>
    tpu.vector_store %arg7[%c0_26, %c24], %105 {strides = array<i32>} : memref<16x32xbf16, #tpu.memory_space<vmem>>, vector<16x8xbf16>,
    %c0_27 = arith.constant 0 : index
    %c0_28 = arith.constant 0 : index
    %107 = vector.load %arg7[%c0_27, %c0_28] : memref<16x32xbf16, #tpu.memory_space<vmem>>, vector<16x32xbf16>
    %c0_29 = arith.constant 0 : index
    %c0_30 = arith.constant 0 : index
    %108 = vector.load %arg4[%c0_29, %c0_30] : memref<32x32xbf16, #tpu.memory_space<vmem>>, vector<32x32xbf16>
    %cst_31 = arith.constant dense<0.000000e+00> : vector<16x32xf32>
    %109 = tpu.matmul %107, %108, %cst_31 {dimension_numbers = #tpu.dot_dimension_numbers<[1], [0], [0], [1], [0, 0, 1, 1], [], []>} : vector<16x32xbf16>, vector<32x32xbf16>, vector<16x32xf32> -> vector<16x32xf32>
    %c0_32 = arith.constant 0 : index
    %c0_33 = arith.constant 0 : index
    %110 = vector.load %arg5[%c0_32, %c0_33] : memref<1x32xf32, #tpu.memory_space<vmem>>, vector<1x32xf32>
    %111 = vector.broadcast %110 : vector<1x32xf32> to vector<16x32xf32>
    %112 = arith.addf %109, %111 : vector<16x32xf32>
    %113 = vector.shape_cast %112 : vector<16x32xf32> to vector<2x8x32xf32>
    %c0_34 = arith.constant 0 : index
    %c0_35 = arith.constant 0 : index
    %c0_36 = arith.constant 0 : index
    %114 = vector.load %arg6[%c0_34, %c0_35, %c0_36] : memref<2x8x32xf32, #tpu.memory_space<vmem>>, vector<2x8x32xf32>
    tpu.vector_store %arg6[%c0_34, %c0_35, %c0_36], %113 {strides = array<i32>} : memref<2x8x32xf32, #tpu.memory_space<vmem>>, vector<2x8x32xf32>,
    return
  }
  func.func @transform_0(%arg0: i32) -> (i32, i32, i32) {
    %c0_i32 = arith.constant 0 : i32
    %c0_i32_0 = arith.constant 0 : i32
    %c0_i32_1 = arith.constant 0 : i32
    return %arg0, %c0_i32, %c0_i32_0 : i32, i32, i32
  }
  func.func @transform_1(%arg0: i32) -> (i32, i32) {
    %c0_i32 = arith.constant 0 : i32
    %c0_i32_0 = arith.constant 0 : i32
    %c0_i32_1 = arith.constant 0 : i32
    return %c0_i32, %c0_i32_0 : i32, i32
  }
  func.func @transform_2(%arg0: i32) -> (i32, i32) {
    %c0_i32 = arith.constant 0 : i32
    %c0_i32_0 = arith.constant 0 : i32
    %c0_i32_1 = arith.constant 0 : i32
    return %c0_i32, %c0_i32_0 : i32, i32
  }
  func.func @transform_3(%arg0: i32) -> (i32, i32) {
    %c0_i32 = arith.constant 0 : i32
    %c0_i32_0 = arith.constant 0 : i32
    %c0_i32_1 = arith.constant 0 : i32
    return %c0_i32, %c0_i32_0 : i32, i32
  }
  func.func @transform_4(%arg0: i32) -> (i32, i32) {
    %c0_i32 = arith.constant 0 : i32
    %c0_i32_0 = arith.constant 0 : i32
    %c0_i32_1 = arith.constant 0 : i32
    return %c0_i32, %c0_i32_0 : i32, i32
  }
  func.func @transform_5(%arg0: i32) -> (i32, i32, i32) {
    %c0_i32 = arith.constant 0 : i32
    %c0_i32_0 = arith.constant 0 : i32
    %c0_i32_1 = arith.constant 0 : i32
    return %arg0, %c0_i32, %c0_i32_0 : i32, i32, i32
  }
}

</mosaic_0001>

<llo_original>
// kernel: tpu_custom_call.1
$region0: #{tpu_custom_call.1}
  #allocation0 [shape = 'u32[]', space=smem, size = 0x4, offset = 0x4, fixed_abs, tag = 'smem constant byte address 0x4 - core index']
  #allocation1 [shape = 'u32[144,128]{1,0:T(1,128)}', space=vmem, size = 0x12000, scoped, tag = 'internal scratch']
  #allocation2 [shape = 'bf16[16,32]{1,0:T(16,128)(2,1)}', space=vmem, size = 0x1000, scoped, tag = 'scratch operand']
  %s0 = inlined_call_operand.hbm [shape: bf16[2,8,32], index: 0, kind: input, shape index: {}]
  %s1 = inlined_call_operand.hbm [shape: bf16[32,96], index: 1, kind: input, shape index: {}]
  %s2 = inlined_call_operand.vmem [shape: f32[1,96], index: 2, kind: input, shape index: {}]
  %s3 = inlined_call_operand.hbm [shape: bf16[32,32], index: 3, kind: input, shape index: {}]
  %s4 = inlined_call_operand.vmem [shape: f32[1,32], index: 4, kind: input, shape index: {}]
  %s5 = inlined_call_operand.hbm [shape: f32[2,8,32], index: 5, kind: output, shape index: {}]
  %s6 = sld [smem:[#allocation0]]
  $region42: #{tpu_custom_call.1} parent=0
    _
  %s8 = ssub.s32 1, %s6
  %s9 = scalar_select 0, %s8, %s6
  $region1: #{tpu_custom_call.1} parent=0
    #allocation3 [shape = 'u8[4096]{0}', space=vmem, size = 0x1000, scoped, tag = 'input window, operand 0, single buffered']
    #allocation4 [shape = 's32[1]{0}', space=sflag, size = 0x4, scoped, tag = 'scoped memory for tpu_custom_call.1']
    #allocation5 [shape = 's32[1]{0}', space=sflag, size = 0x4, scoped, tag = 'scoped memory for tpu_custom_call.1']
    #allocation6 [shape = 'u8[8192]{0}', space=vmem, size = 0x2000, scoped, tag = 'input window, operand 1, single buffered']
    #allocation7 [shape = 's32[1]{0}', space=sflag, size = 0x4, scoped, tag = 'scoped memory for tpu_custom_call.1']
    #allocation8 [shape = 'u8[8192]{0}', space=vmem, size = 0x2000, scoped, tag = 'input window, operand 3, single buffered']
    #allocation9 [shape = 'u8[8192]{0}', space=vmem, size = 0x2000, scoped, tag = 'output window, operand 0, single buffered']
    %10 = vsyncpa [#allocation4], 0
    %11 = vsyncpa [#allocation7], 0
    %12 = vsyncpa [#allocation5], 0
    // Predicated region
    $region2: #{tpu_custom_call.1} parent=1 // pred_check
      _
    $region3: #{tpu_custom_call.1} parent=1 // pred_check_branch
      %14 = sbr.rel (0) target = $region5
    $region4: #{tpu_custom_call.1} parent=1 // pred_region
      %s16 = ssub.s32 128, 128
      %17 = vsyncadd [#allocation4], %s16
      %s18 = sshll.u32 [#allocation3], 4
      %s19 = int_to_ptr.vmem [resolvable:$true] %s18
      %24 = dma.hbm_to_vmem [thread:$0]  %s0, 128, %s19, [#allocation4], 64, 64, 4
    $region5: #{tpu_custom_call.1} parent=1 // pred_fallthru
      _
    // Predicated region
    $region6: #{tpu_custom_call.1} parent=1 // pred_check
      _
    $region7: #{tpu_custom_call.1} parent=1 // pred_check_branch
      %26 = sbr.rel (0) target = $region9
    $region8: #{tpu_custom_call.1} parent=1 // pred_region
      %s28 = ssub.s32 256, 256
      %29 = vsyncadd [#allocation7], %s28
      %s30 = sshll.u32 [#allocation6], 4
      %s31 = int_to_ptr.vmem [resolvable:$true] %s30
      %36 = dma.hbm_to_vmem [thread:$0]  %s1, 256, %s31, [#allocation7], 64, 64, 4
    $region9: #{tpu_custom_call.1} parent=1 // pred_fallthru
      _
    // Predicated region
    $region10: #{tpu_custom_call.1} parent=1 // pred_check
      _
    $region11: #{tpu_custom_call.1} parent=1 // pred_check_branch
      %38 = sbr.rel (0) target = $region13
    $region12: #{tpu_custom_call.1} parent=1 // pred_region
      _
    $region13: #{tpu_custom_call.1} parent=1 // pred_fallthru
      _
    // Predicated region
    $region14: #{tpu_custom_call.1} parent=1 // pred_check
      _
    $region15: #{tpu_custom_call.1} parent=1 // pred_check_branch
      %40 = sbr.rel (0) target = $region17
    $region16: #{tpu_custom_call.1} parent=1 // pred_region
      %s42 = ssub.s32 256, 256
      %43 = vsyncadd [#allocation7], %s42
      %s44 = sshll.u32 [#allocation8], 4
      %s45 = int_to_ptr.vmem [resolvable:$true] %s44
      %50 = dma.hbm_to_vmem [thread:$0]  %s3, 256, %s45, [#allocation7], 64, 64, 4
    $region17: #{tpu_custom_call.1} parent=1 // pred_fallthru
      _
    // Predicated region
    $region18: #{tpu_custom_call.1} parent=1 // pred_check
      _
    $region19: #{tpu_custom_call.1} parent=1 // pred_check_branch
      %52 = sbr.rel (0) target = $region21
    $region20: #{tpu_custom_call.1} parent=1 // pred_region
      _
    $region21: #{tpu_custom_call.1} parent=1 // pred_fallthru
      _
    // Predicated region
    $region22: #{tpu_custom_call.1} parent=1 // pred_check
      _
    $region23: #{tpu_custom_call.1} parent=1 // pred_check_branch
      %54 = sbr.rel (0) target = $region25
    $region24: #{tpu_custom_call.1} parent=1 // pred_region
      %55 = dma.done [#allocation4], 128
    $region25: #{tpu_custom_call.1} parent=1 // pred_fallthru
      _
    // Predicated region
    $region26: #{tpu_custom_call.1} parent=1 // pred_check
      _
    $region27: #{tpu_custom_call.1} parent=1 // pred_check_branch
      %57 = sbr.rel (0) target = $region29
    $region28: #{tpu_custom_call.1} parent=1 // pred_region
      %58 = dma.done [#allocation7], 256
    $region29: #{tpu_custom_call.1} parent=1 // pred_fallthru
      _
    // Predicated region
    $region30: #{tpu_custom_call.1} parent=1 // pred_check
      _
    $region31: #{tpu_custom_call.1} parent=1 // pred_check_branch
      %60 = sbr.rel (0) target = $region33
    $region32: #{tpu_custom_call.1} parent=1 // pred_region
      %61 = dma.done [#allocation7], 256
    $region33: #{tpu_custom_call.1} parent=1 // pred_fallthru
      _
    %v63 = vld [vmem:[#allocation3] sm:$0xf]
    %v64 = vld [vmem:[#allocation3 + $0x4] sm:$0xf]
    %v65 = vld [vmem:[#allocation6] sm:$0xf]
    %v66 = vld [vmem:[#allocation6 + $0x4] sm:$0xf]
    %v67 = vld [vmem:[#allocation6 + $0x8] sm:$0xf]
    %v68 = vld [vmem:[#allocation6 + $0xc] sm:$0xf]
    %v69 = vld [vmem:[%s2] sm:$0x1]
    %v71 = vlaneseq
    %v72 = vshrl.u32 %v71, 7
    %v73 = vsub.s32 0, %v72
    %v74 = vrot.slane %v69, %v73
    %v78 = vunpack.c.l.b16 %v63
    %v79 = vunpack.c.l.b16 %v64
    %v80 = vpack.c.b16 %v79, %v78
    %v85 = vunpack.c.l.b16 %v65
    %v86 = vunpack.c.l.b16 %v66
    %v87 = vunpack.c.l.b16 %v67
    %v88 = vunpack.c.l.b16 %v68
    %v89 = vpack.c.b16 %v86, %v85
    %v90 = vpack.c.b16 %v88, %v87
    %vm93 = vcmask 261120
    %v95 = vsel %vm93, %v80, 0
    %97 = vmatprep.subr.bf16.mxu0 0
    %98 = vmatpush1.bf16.msra.mxu0 %v89
    %99 = vmatprep.subr.bf16.mxu0 0
    %100 = vmatpush1.bf16.msra.mxu0 %v90
    %101 = vmatprep.subr.bf16.mxu0 0
    %102 = vmatpush1.bf16.msra.mxu0 0
    %103 = vmatprep.subr.bf16.mxu0 0
    %104 = vmatpush1.bf16.msra.mxu0 0
    %105 = vmatprep.subr.bf16.mxu0 0
    %106 = vmatpush1.bf16.msra.mxu0 0
    %107 = vmatprep.subr.bf16.mxu0 0
    %108 = vmatpush1.bf16.msra.mxu0 0
    %109 = vmatprep.subr.bf16.mxu0 0
    %110 = vmatpush1.bf16.msra.mxu0 0
    %111 = vmatprep.subr.bf16.mxu0 0
    %112 = vmatpush1.bf16.msra.mxu0 0
    %113 = vmatprep.subr.bf16.mxu0 0
    %114 = vmatpush1.bf16.msra.mxu0 0
    %115 = vmatprep.subr.bf16.mxu0 0
    %116 = vmatpush1.bf16.msra.mxu0 0
    %117 = vmatprep.subr.bf16.mxu0 0
    %118 = vmatpush1.bf16.msra.mxu0 0
    %119 = vmatprep.subr.bf16.mxu0 0
    %120 = vmatpush1.bf16.msra.mxu0 0
    %121 = vmatprep.subr.bf16.mxu0 0
    %122 = vmatpush1.bf16.msra.mxu0 0
    %123 = vmatprep.subr.bf16.mxu0 0
    %124 = vmatpush1.bf16.msra.mxu0 0
    %125 = vmatprep.subr.bf16.mxu0 0
    %126 = vmatpush1.bf16.msra.mxu0 0
    %127 = vmatprep.subr.bf16.mxu0 0
    %128 = vmatpush1.bf16.msra.mxu0 0
    %129 = vmatprep.mubr.bf16.mxu0 0
    %130 = vmatmul.mubr.bf16.gmra.mrb[0].mxu0 %v95
    %v131 = vpop.f32.mrb[0].mxu0
    %v132 = vadd.f32 %v74, %v131
    %v133 = vpop.f32.mrb[0].mxu0
    %v134 = vpop.f32.mrb[0].mxu0
    %v135 = vadd.f32 %v74, %v134
    %v136 = vpop.f32.mrb[0].mxu0
    %137 = vdwg.mxu0
    %v138 = vpack.c.bf16 %v132, %v132
    %v139 = vpack.c.bf16 %v135, %v135
    %141 = vrot.lane.b32.xlu0 %v138, 96
    %v142 = vpop.permute.xlu0 %141
    %vm143 = vcmask 64512
    %v145 = vsel %vm143, %v138, 0
    %v148 = vsel %vm143, %v142, 0
    %150 = vmatprep.subr.bf16.mxu0 0
    %151 = vmatpush1.bf16.xpose.msra.mxu0 %v148
    %152 = vmatprep.subr.bf16.mxu0 0
    %153 = vmatpush1.bf16.xpose.msra.mxu0 0
    %154 = vmatprep.subr.bf16.mxu0 0
    %155 = vmatpush1.bf16.xpose.msra.mxu0 0
    %156 = vmatprep.subr.bf16.mxu0 0
    %157 = vmatpush1.bf16.xpose.msra.mxu0 0
    %158 = vmatprep.subr.bf16.mxu0 0
    %159 = vmatpush1.bf16.xpose.msra.mxu0 0
    %160 = vmatprep.subr.bf16.mxu0 0
    %161 = vmatpush1.bf16.xpose.msra.mxu0 0
    %162 = vmatprep.subr.bf16.mxu0 0
    %163 = vmatpush1.bf16.xpose.msra.mxu0 0
    %164 = vmatprep.subr.bf16.mxu0 0
    %165 = vmatpush1.bf16.xpose.msra.mxu0 0
    %166 = vmatprep.subr.bf16.mxu0 0
    %167 = vmatpush1.bf16.xpose.msra.mxu0 0
    %168 = vmatprep.subr.bf16.mxu0 0
    %169 = vmatpush1.bf16.xpose.msra.mxu0 0
    %170 = vmatprep.subr.bf16.mxu0 0
    %171 = vmatpush1.bf16.xpose.msra.mxu0 0
    %172 = vmatprep.subr.bf16.mxu0 0
    %173 = vmatpush1.bf16.xpose.msra.mxu0 0
    %174 = vmatprep.subr.bf16.mxu0 0
    %175 = vmatpush1.bf16.xpose.msra.mxu0 0
    %176 = vmatprep.subr.bf16.mxu0 0
    %177 = vmatpush1.bf16.xpose.msra.mxu0 0
    %178 = vmatprep.subr.bf16.mxu0 0
    %179 = vmatpush1.bf16.xpose.msra.mxu0 0
    %180 = vmatprep.subr.bf16.mxu0 0
    %181 = vmatpush1.bf16.xpose.msra.mxu0 0
    %182 = vmatprep.mubr.bf16.mxu0 0
    %183 = vmatmul.mubr.bf16.gmra.mrb[0].mxu0 %v145
    %v184 = vpop.f32.mrb[0].mxu0
    %v185 = vadd.f32 0.0, %v184
    %v186 = vpop.f32.mrb[0].mxu0
    %v187 = vpop.f32.mrb[0].mxu0
    %v188 = vpop.f32.mrb[0].mxu0
    %189 = vdwg.mxu0
    %191 = vrot.lane.b32.xlu0 %v139, 96
    %v192 = vpop.permute.xlu0 %191
    %v194 = vsel %vm143, %v139, 0
    %v197 = vsel %vm143, %v192, 0
    %199 = vmatprep.subr.bf16.mxu0 0
    %200 = vmatpush1.bf16.xpose.msra.mxu0 %v197
    %201 = vmatprep.subr.bf16.mxu0 0
    %202 = vmatpush1.bf16.xpose.msra.mxu0 0
    %203 = vmatprep.subr.bf16.mxu0 0
    %204 = vmatpush1.bf16.xpose.msra.mxu0 0
    %205 = vmatprep.subr.bf16.mxu0 0
    %206 = vmatpush1.bf16.xpose.msra.mxu0 0
    %207 = vmatprep.subr.bf16.mxu0 0
    %208 = vmatpush1.bf16.xpose.msra.mxu0 0
    %209 = vmatprep.subr.bf16.mxu0 0
    %210 = vmatpush1.bf16.xpose.msra.mxu0 0
    %211 = vmatprep.subr.bf16.mxu0 0
    %212 = vmatpush1.bf16.xpose.msra.mxu0 0
    %213 = vmatprep.subr.bf16.mxu0 0
    %214 = vmatpush1.bf16.xpose.msra.mxu0 0
    %215 = vmatprep.subr.bf16.mxu0 0
    %216 = vmatpush1.bf16.xpose.msra.mxu0 0
    %217 = vmatprep.subr.bf16.mxu0 0
    %218 = vmatpush1.bf16.xpose.msra.mxu0 0
    %219 = vmatprep.subr.bf16.mxu0 0
    %220 = vmatpush1.bf16.xpose.msra.mxu0 0
    %221 = vmatprep.subr.bf16.mxu0 0
    %222 = vmatpush1.bf16.xpose.msra.mxu0 0
    %223 = vmatprep.subr.bf16.mxu0 0
    %224 = vmatpush1.bf16.xpose.msra.mxu0 0
    %225 = vmatprep.subr.bf16.mxu0 0
    %226 = vmatpush1.bf16.xpose.msra.mxu0 0
    %227 = vmatprep.subr.bf16.mxu0 0
    %228 = vmatpush1.bf16.xpose.msra.mxu0 0
    %229 = vmatprep.subr.bf16.mxu0 0
    %230 = vmatpush1.bf16.xpose.msra.mxu0 0
    %231 = vmatprep.mubr.bf16.mxu0 0
    %232 = vmatmul.mubr.bf16.gmra.mrb[0].mxu0 %v194
    %v233 = vpop.f32.mrb[0].mxu0
    %v234 = vadd.f32 0.0, %v233
    %v235 = vpop.f32.mrb[0].mxu0
    %v236 = vpop.f32.mrb[0].mxu0
    %v237 = vpop.f32.mrb[0].mxu0
    %238 = vdwg.mxu0
    %v239 = vsel %vm143, %v185, -inf
    %240 = vmax.xlane.f32.xlu0 %v239
    %v241 = vpop.xlane.xlu0 %240
    %v242 = vsel %vm143, %v234, -inf
    %243 = vmax.xlane.f32.xlu0 %v242
    %v244 = vpop.xlane.xlu0 %243
    %v245 = vsub.f32 %v185, %v241
    %v246 = vsub.f32 %v234, %v244
    %v247 = vmul.f32 %v245, 1.442695
    %v248 = vpow.pop %v247
    %v249 = vmul.f32 %v246, 1.442695
    %v250 = vpow.pop %v249
    %v251 = vsel %vm143, %v248, 0.0
    %252 = vadd.xlane.f32.xlu0 %v251
    %v253 = vpop.xlane.xlu0 %252
    %v254 = vsel %vm143, %v250, 0.0
    %255 = vadd.xlane.f32.xlu0 %v254
    %v256 = vpop.xlane.xlu0 %255
    %v257 = vrcp.pop %v253
    %v258 = vrcp.pop %v256
    %v259 = vmul.f32 %v248, %v257
    %v260 = vmul.f32 %v250, %v258
    %v261 = vpack.c.bf16 %v259, %v259
    %v262 = vpack.c.bf16 %v260, %v260
    %263 = vrot.lane.b32.xlu0 %v138, 64
    %v264 = vpop.permute.xlu0 %263
    %v266 = vsel %vm143, %v261, 0
    %vm268 = vcmask 1043456
    %v270 = vsel %vm268, %v264, 0
    %272 = vmatprep.subr.bf16.mxu0 0
    %273 = vmatpush1.bf16.msra.mxu0 %v270
    %274 = vmatprep.subr.bf16.mxu0 0
    %275 = vmatpush1.bf16.msra.mxu0 0
    %276 = vmatprep.subr.bf16.mxu0 0
    %277 = vmatpush1.bf16.msra.mxu0 0
    %278 = vmatprep.subr.bf16.mxu0 0
    %279 = vmatpush1.bf16.msra.mxu0 0
    %280 = vmatprep.subr.bf16.mxu0 0
    %281 = vmatpush1.bf16.msra.mxu0 0
    %282 = vmatprep.subr.bf16.mxu0 0
    %283 = vmatpush1.bf16.msra.mxu0 0
    %284 = vmatprep.subr.bf16.mxu0 0
    %285 = vmatpush1.bf16.msra.mxu0 0
    %286 = vmatprep.subr.bf16.mxu0 0
    %287 = vmatpush1.bf16.msra.mxu0 0
    %288 = vmatprep.subr.bf16.mxu0 0
    %289 = vmatpush1.bf16.msra.mxu0 0
    %290 = vmatprep.subr.bf16.mxu0 0
    %291 = vmatpush1.bf16.msra.mxu0 0
    %292 = vmatprep.subr.bf16.mxu0 0
    %293 = vmatpush1.bf16.msra.mxu0 0
    %294 = vmatprep.subr.bf16.mxu0 0
    %295 = vmatpush1.bf16.msra.mxu0 0
    %296 = vmatprep.subr.bf16.mxu0 0
    %297 = vmatpush1.bf16.msra.mxu0 0
    %298 = vmatprep.subr.bf16.mxu0 0
    %299 = vmatpush1.bf16.msra.mxu0 0
    %300 = vmatprep.subr.bf16.mxu0 0
    %301 = vmatpush1.bf16.msra.mxu0 0
    %302 = vmatprep.subr.bf16.mxu0 0
    %303 = vmatpush1.bf16.msra.mxu0 0
    %304 = vmatprep.mubr.bf16.mxu0 0
    %305 = vmatmul.mubr.bf16.gmra.mrb[0].mxu0 %v266
    %v306 = vpop.f32.mrb[0].mxu0
    %v307 = vadd.f32 0.0, %v306
    %v308 = vpop.f32.mrb[0].mxu0
    %v309 = vpop.f32.mrb[0].mxu0
    %v310 = vpop.f32.mrb[0].mxu0
    %311 = vdwg.mxu0
    %312 = vrot.lane.b32.xlu0 %v139, 64
    %v313 = vpop.permute.xlu0 %312
    %v315 = vsel %vm143, %v262, 0
    %v318 = vsel %vm268, %v313, 0
    %320 = vmatprep.subr.bf16.mxu0 0
    %321 = vmatpush1.bf16.msra.mxu0 %v318
    %322 = vmatprep.subr.bf16.mxu0 0
    %323 = vmatpush1.bf16.msra.mxu0 0
    %324 = vmatprep.subr.bf16.mxu0 0
    %325 = vmatpush1.bf16.msra.mxu0 0
    %326 = vmatprep.subr.bf16.mxu0 0
    %327 = vmatpush1.bf16.msra.mxu0 0
    %328 = vmatprep.subr.bf16.mxu0 0
    %329 = vmatpush1.bf16.msra.mxu0 0
    %330 = vmatprep.subr.bf16.mxu0 0
    %331 = vmatpush1.bf16.msra.mxu0 0
    %332 = vmatprep.subr.bf16.mxu0 0
    %333 = vmatpush1.bf16.msra.mxu0 0
    %334 = vmatprep.subr.bf16.mxu0 0
    %335 = vmatpush1.bf16.msra.mxu0 0
    %336 = vmatprep.subr.bf16.mxu0 0
    %337 = vmatpush1.bf16.msra.mxu0 0
    %338 = vmatprep.subr.bf16.mxu0 0
    %339 = vmatpush1.bf16.msra.mxu0 0
    %340 = vmatprep.subr.bf16.mxu0 0
    %341 = vmatpush1.bf16.msra.mxu0 0
    %342 = vmatprep.subr.bf16.mxu0 0
    %343 = vmatpush1.bf16.msra.mxu0 0
    %344 = vmatprep.subr.bf16.mxu0 0
    %345 = vmatpush1.bf16.msra.mxu0 0
    %346 = vmatprep.subr.bf16.mxu0 0
    %347 = vmatpush1.bf16.msra.mxu0 0
    %348 = vmatprep.subr.bf16.mxu0 0
    %349 = vmatpush1.bf16.msra.mxu0 0
    %350 = vmatprep.subr.bf16.mxu0 0
    %351 = vmatpush1.bf16.msra.mxu0 0
    %352 = vmatprep.mubr.bf16.mxu0 0
    %353 = vmatmul.mubr.bf16.gmra.mrb[0].mxu0 %v315
    %v354 = vpop.f32.mrb[0].mxu0
    %v355 = vadd.f32 0.0, %v354
    %v356 = vpop.f32.mrb[0].mxu0
    %v357 = vpop.f32.mrb[0].mxu0
    %v358 = vpop.f32.mrb[0].mxu0
    %359 = vdwg.mxu0
    %v360 = vpack.c.bf16 %v355, %v307
    %361 = vst.msk [vmem:[#allocation2] sm:$0xff] %vm143, %v360
    %362 = vrot.lane.b32.xlu0 %v138, 120
    %v363 = vpop.permute.xlu0 %362
    %364 = vrot.lane.b32.xlu0 %v138, 88
    %v365 = vpop.permute.xlu0 %364
    %v367 = vsel %vm143, %v363, 0
    %v370 = vsel %vm143, %v365, 0
    %372 = vmatprep.subr.bf16.mxu0 0
    %373 = vmatpush1.bf16.xpose.msra.mxu0 %v370
    %374 = vmatprep.subr.bf16.mxu0 0
    %375 = vmatpush1.bf16.xpose.msra.mxu0 0
    %376 = vmatprep.subr.bf16.mxu0 0
    %377 = vmatpush1.bf16.xpose.msra.mxu0 0
    %378 = vmatprep.subr.bf16.mxu0 0
    %379 = vmatpush1.bf16.xpose.msra.mxu0 0
    %380 = vmatprep.subr.bf16.mxu0 0
    %381 = vmatpush1.bf16.xpose.msra.mxu0 0
    %382 = vmatprep.subr.bf16.mxu0 0
    %383 = vmatpush1.bf16.xpose.msra.mxu0 0
    %384 = vmatprep.subr.bf16.mxu0 0
    %385 = vmatpush1.bf16.xpose.msra.mxu0 0
    %386 = vmatprep.subr.bf16.mxu0 0
    %387 = vmatpush1.bf16.xpose.msra.mxu0 0
    %388 = vmatprep.subr.bf16.mxu0 0
    %389 = vmatpush1.bf16.xpose.msra.mxu0 0
    %390 = vmatprep.subr.bf16.mxu0 0
    %391 = vmatpush1.bf16.xpose.msra.mxu0 0
    %392 = vmatprep.subr.bf16.mxu0 0
    %393 = vmatpush1.bf16.xpose.msra.mxu0 0
    %394 = vmatprep.subr.bf16.mxu0 0
    %395 = vmatpush1.bf16.xpose.msra.mxu0 0
    %396 = vmatprep.subr.bf16.mxu0 0
    %397 = vmatpush1.bf16.xpose.msra.mxu0 0
    %398 = vmatprep.subr.bf16.mxu0 0
    %399 = vmatpush1.bf16.xpose.msra.mxu0 0
    %400 = vmatprep.subr.bf16.mxu0 0
    %401 = vmatpush1.bf16.xpose.msra.mxu0 0
    %402 = vmatprep.subr.bf16.mxu0 0
    %403 = vmatpush1.bf16.xpose.msra.mxu0 0
    %404 = vmatprep.mubr.bf16.mxu0 0
    %405 = vmatmul.mubr.bf16.gmra.mrb[0].mxu0 %v367
    %v406 = vpop.f32.mrb[0].mxu0
    %v407 = vadd.f32 0.0, %v406
    %v408 = vpop.f32.mrb[0].mxu0
    %v409 = vpop.f32.mrb[0].mxu0
    %v410 = vpop.f32.mrb[0].mxu0
    %411 = vdwg.mxu0
    %412 = vrot.lane.b32.xlu0 %v139, 120
    %v413 = vpop.permute.xlu0 %412
    %414 = vrot.lane.b32.xlu0 %v139, 88
    %v415 = vpop.permute.xlu0 %414
    %v417 = vsel %vm143, %v413, 0
    %v420 = vsel %vm143, %v415, 0
    %422 = vmatprep.subr.bf16.mxu0 0
    %423 = vmatpush1.bf16.xpose.msra.mxu0 %v420
    %424 = vmatprep.subr.bf16.mxu0 0
    %425 = vmatpush1.bf16.xpose.msra.mxu0 0
    %426 = vmatprep.subr.bf16.mxu0 0
    %427 = vmatpush1.bf16.xpose.msra.mxu0 0
    %428 = vmatprep.subr.bf16.mxu0 0
    %429 = vmatpush1.bf16.xpose.msra.mxu0 0
    %430 = vmatprep.subr.bf16.mxu0 0
    %431 = vmatpush1.bf16.xpose.msra.mxu0 0
    %432 = vmatprep.subr.bf16.mxu0 0
    %433 = vmatpush1.bf16.xpose.msra.mxu0 0
    %434 = vmatprep.subr.bf16.mxu0 0
    %435 = vmatpush1.bf16.xpose.msra.mxu0 0
    %436 = vmatprep.subr.bf16.mxu0 0
    %437 = vmatpush1.bf16.xpose.msra.mxu0 0
    %438 = vmatprep.subr.bf16.mxu0 0
    %439 = vmatpush1.bf16.xpose.msra.mxu0 0
    %440 = vmatprep.subr.bf16.mxu0 0
    %441 = vmatpush1.bf16.xpose.msra.mxu0 0
    %442 = vmatprep.subr.bf16.mxu0 0
    %443 = vmatpush1.bf16.xpose.msra.mxu0 0
    %444 = vmatprep.subr.bf16.mxu0 0
    %445 = vmatpush1.bf16.xpose.msra.mxu0 0
    %446 = vmatprep.subr.bf16.mxu0 0
    %447 = vmatpush1.bf16.xpose.msra.mxu0 0
    %448 = vmatprep.subr.bf16.mxu0 0
    %449 = vmatpush1.bf16.xpose.msra.mxu0 0
    %450 = vmatprep.subr.bf16.mxu0 0
    %451 = vmatpush1.bf16.xpose.msra.mxu0 0
    %452 = vmatprep.subr.bf16.mxu0 0
    %453 = vmatpush1.bf16.xpose.msra.mxu0 0
    %454 = vmatprep.mubr.bf16.mxu0 0
    %455 = vmatmul.mubr.bf16.gmra.mrb[0].mxu0 %v417
    %v456 = vpop.f32.mrb[0].mxu0
    %v457 = vadd.f32 0.0, %v456
    %v458 = vpop.f32.mrb[0].mxu0
    %v459 = vpop.f32.mrb[0].mxu0
    %v460 = vpop.f32.mrb[0].mxu0
    %461 = vdwg.mxu0
    %v462 = vsel %vm143, %v407, -inf
    %463 = vmax.xlane.f32.xlu0 %v462
    %v464 = vpop.xlane.xlu0 %463
    %v465 = vsel %vm143, %v457, -inf
    %466 = vmax.xlane.f32.xlu0 %v465
    %v467 = vpop.xlane.xlu0 %466
    %v468 = vsub.f32 %v407, %v464
    %v469 = vsub.f32 %v457, %v467
    %v470 = vmul.f32 %v468, 1.442695
    %v471 = vpow.pop %v470
    %v472 = vmul.f32 %v469, 1.442695
    %v473 = vpow.pop %v472
    %v474 = vsel %vm143, %v471, 0.0
    %475 = vadd.xlane.f32.xlu0 %v474
    %v476 = vpop.xlane.xlu0 %475
    %v477 = vsel %vm143, %v473, 0.0
    %478 = vadd.xlane.f32.xlu0 %v477
    %v479 = vpop.xlane.xlu0 %478
    %v480 = vrcp.pop %v476
    %v481 = vrcp.pop %v479
    %v482 = vmul.f32 %v471, %v480
    %v483 = vmul.f32 %v473, %v481
    %v484 = vpack.c.bf16 %v482, %v482
    %v485 = vpack.c.bf16 %v483, %v483
    %486 = vrot.lane.b32.xlu0 %v138, 56
    %v487 = vpop.permute.xlu0 %486
    %v489 = vsel %vm143, %v484, 0
    %v492 = vsel %vm268, %v487, 0
    %494 = vmatprep.subr.bf16.mxu0 0
    %495 = vmatpush1.bf16.msra.mxu0 %v492
    %496 = vmatprep.subr.bf16.mxu0 0
    %497 = vmatpush1.bf16.msra.mxu0 0
    %498 = vmatprep.subr.bf16.mxu0 0
    %499 = vmatpush1.bf16.msra.mxu0 0
    %500 = vmatprep.subr.bf16.mxu0 0
    %501 = vmatpush1.bf16.msra.mxu0 0
    %502 = vmatprep.subr.bf16.mxu0 0
    %503 = vmatpush1.bf16.msra.mxu0 0
    %504 = vmatprep.subr.bf16.mxu0 0
    %505 = vmatpush1.bf16.msra.mxu0 0
    %506 = vmatprep.subr.bf16.mxu0 0
    %507 = vmatpush1.bf16.msra.mxu0 0
    %508 = vmatprep.subr.bf16.mxu0 0
    %509 = vmatpush1.bf16.msra.mxu0 0
    %510 = vmatprep.subr.bf16.mxu0 0
    %511 = vmatpush1.bf16.msra.mxu0 0
    %512 = vmatprep.subr.bf16.mxu0 0
    %513 = vmatpush1.bf16.msra.mxu0 0
    %514 = vmatprep.subr.bf16.mxu0 0
    %515 = vmatpush1.bf16.msra.mxu0 0
    %516 = vmatprep.subr.bf16.mxu0 0
    %517 = vmatpush1.bf16.msra.mxu0 0
    %518 = vmatprep.subr.bf16.mxu0 0
    %519 = vmatpush1.bf16.msra.mxu0 0
    %520 = vmatprep.subr.bf16.mxu0 0
    %521 = vmatpush1.bf16.msra.mxu0 0
    %522 = vmatprep.subr.bf16.mxu0 0
    %523 = vmatpush1.bf16.msra.mxu0 0
    %524 = vmatprep.subr.bf16.mxu0 0
    %525 = vmatpush1.bf16.msra.mxu0 0
    %526 = vmatprep.mubr.bf16.mxu0 0
    %527 = vmatmul.mubr.bf16.gmra.mrb[0].mxu0 %v489
    %v528 = vpop.f32.mrb[0].mxu0
    %v529 = vadd.f32 0.0, %v528
    %v530 = vpop.f32.mrb[0].mxu0
    %v531 = vpop.f32.mrb[0].mxu0
    %v532 = vpop.f32.mrb[0].mxu0
    %533 = vdwg.mxu0
    %534 = vrot.lane.b32.xlu0 %v139, 56
    %v535 = vpop.permute.xlu0 %534
    %v537 = vsel %vm143, %v485, 0
    %v540 = vsel %vm268, %v535, 0
    %542 = vmatprep.subr.bf16.mxu0 0
    %543 = vmatpush1.bf16.msra.mxu0 %v540
    %544 = vmatprep.subr.bf16.mxu0 0
    %545 = vmatpush1.bf16.msra.mxu0 0
    %546 = vmatprep.subr.bf16.mxu0 0
    %547 = vmatpush1.bf16.msra.mxu0 0
    %548 = vmatprep.subr.bf16.mxu0 0
    %549 = vmatpush1.bf16.msra.mxu0 0
    %550 = vmatprep.subr.bf16.mxu0 0
    %551 = vmatpush1.bf16.msra.mxu0 0
    %552 = vmatprep.subr.bf16.mxu0 0
    %553 = vmatpush1.bf16.msra.mxu0 0
    %554 = vmatprep.subr.bf16.mxu0 0
    %555 = vmatpush1.bf16.msra.mxu0 0
    %556 = vmatprep.subr.bf16.mxu0 0
    %557 = vmatpush1.bf16.msra.mxu0 0
    %558 = vmatprep.subr.bf16.mxu0 0
    %559 = vmatpush1.bf16.msra.mxu0 0
    %560 = vmatprep.subr.bf16.mxu0 0
    %561 = vmatpush1.bf16.msra.mxu0 0
    %562 = vmatprep.subr.bf16.mxu0 0
    %563 = vmatpush1.bf16.msra.mxu0 0
    %564 = vmatprep.subr.bf16.mxu0 0
    %565 = vmatpush1.bf16.msra.mxu0 0
    %566 = vmatprep.subr.bf16.mxu0 0
    %567 = vmatpush1.bf16.msra.mxu0 0
    %568 = vmatprep.subr.bf16.mxu0 0
    %569 = vmatpush1.bf16.msra.mxu0 0
    %570 = vmatprep.subr.bf16.mxu0 0
    %571 = vmatpush1.bf16.msra.mxu0 0
    %572 = vmatprep.subr.bf16.mxu0 0
    %573 = vmatpush1.bf16.msra.mxu0 0
    %574 = vmatprep.mubr.bf16.mxu0 0
    %575 = vmatmul.mubr.bf16.gmra.mrb[0].mxu0 %v537
    %v576 = vpop.f32.mrb[0].mxu0
    %v577 = vadd.f32 0.0, %v576
    %v578 = vpop.f32.mrb[0].mxu0
    %v579 = vpop.f32.mrb[0].mxu0
    %v580 = vpop.f32.mrb[0].mxu0
    %581 = vdwg.mxu0
    %v582 = vpack.c.bf16 %v577, %v529
    %584 = vrot.lane.b32.xlu0 %v582, 8
    %v585 = vpop.permute.xlu0 %584
    %vm587 = vcmask 130112
    %588 = vst.msk [vmem:[#allocation2] sm:$0xff] %vm587, %v585
    %589 = vrot.lane.b32.xlu0 %v138, 112
    %v590 = vpop.permute.xlu0 %589
    %591 = vrot.lane.b32.xlu0 %v138, 80
    %v592 = vpop.permute.xlu0 %591
    %v594 = vsel %vm143, %v590, 0
    %v597 = vsel %vm143, %v592, 0
    %599 = vmatprep.subr.bf16.mxu0 0
    %600 = vmatpush1.bf16.xpose.msra.mxu0 %v597
    %601 = vmatprep.subr.bf16.mxu0 0
    %602 = vmatpush1.bf16.xpose.msra.mxu0 0
    %603 = vmatprep.subr.bf16.mxu0 0
    %604 = vmatpush1.bf16.xpose.msra.mxu0 0
    %605 = vmatprep.subr.bf16.mxu0 0
    %606 = vmatpush1.bf16.xpose.msra.mxu0 0
    %607 = vmatprep.subr.bf16.mxu0 0
    %608 = vmatpush1.bf16.xpose.msra.mxu0 0
    %609 = vmatprep.subr.bf16.mxu0 0
    %610 = vmatpush1.bf16.xpose.msra.mxu0 0
    %611 = vmatprep.subr.bf16.mxu0 0
    %612 = vmatpush1.bf16.xpose.msra.mxu0 0
    %613 = vmatprep.subr.bf16.mxu0 0
    %614 = vmatpush1.bf16.xpose.msra.mxu0 0
    %615 = vmatprep.subr.bf16.mxu0 0
    %616 = vmatpush1.bf16.xpose.msra.mxu0 0
    %617 = vmatprep.subr.bf16.mxu0 0
    %618 = vmatpush1.bf16.xpose.msra.mxu0 0
    %619 = vmatprep.subr.bf16.mxu0 0
    %620 = vmatpush1.bf16.xpose.msra.mxu0 0
    %621 = vmatprep.subr.bf16.mxu0 0
    %622 = vmatpush1.bf16.xpose.msra.mxu0 0
    %623 = vmatprep.subr.bf16.mxu0 0
    %624 = vmatpush1.bf16.xpose.msra.mxu0 0
    %625 = vmatprep.subr.bf16.mxu0 0
    %626 = vmatpush1.bf16.xpose.msra.mxu0 0
    %627 = vmatprep.subr.bf16.mxu0 0
    %628 = vmatpush1.bf16.xpose.msra.mxu0 0
    %629 = vmatprep.subr.bf16.mxu0 0
    %630 = vmatpush1.bf16.xpose.msra.mxu0 0
    %631 = vmatprep.mubr.bf16.mxu0 0
    %632 = vmatmul.mubr.bf16.gmra.mrb[0].mxu0 %v594
    %v633 = vpop.f32.mrb[0].mxu0
    %v634 = vadd.f32 0.0, %v633
    %v635 = vpop.f32.mrb[0].mxu0
    %v636 = vpop.f32.mrb[0].mxu0
    %v637 = vpop.f32.mrb[0].mxu0
    %638 = vdwg.mxu0
    %639 = vrot.lane.b32.xlu0 %v139, 112
    %v640 = vpop.permute.xlu0 %639
    %641 = vrot.lane.b32.xlu0 %v139, 80
    %v642 = vpop.permute.xlu0 %641
    %v644 = vsel %vm143, %v640, 0
    %v647 = vsel %vm143, %v642, 0
    %649 = vmatprep.subr.bf16.mxu0 0
    %650 = vmatpush1.bf16.xpose.msra.mxu0 %v647
    %651 = vmatprep.subr.bf16.mxu0 0
    %652 = vmatpush1.bf16.xpose.msra.mxu0 0
    %653 = vmatprep.subr.bf16.mxu0 0
    %654 = vmatpush1.bf16.xpose.msra.mxu0 0
    %655 = vmatprep.subr.bf16.mxu0 0
    %656 = vmatpush1.bf16.xpose.msra.mxu0 0
    %657 = vmatprep.subr.bf16.mxu0 0
    %658 = vmatpush1.bf16.xpose.msra.mxu0 0
    %659 = vmatprep.subr.bf16.mxu0 0
    %660 = vmatpush1.bf16.xpose.msra.mxu0 0
    %661 = vmatprep.subr.bf16.mxu0 0
    %662 = vmatpush1.bf16.xpose.msra.mxu0 0
    %663 = vmatprep.subr.bf16.mxu0 0
    %664 = vmatpush1.bf16.xpose.msra.mxu0 0
    %665 = vmatprep.subr.bf16.mxu0 0
    %666 = vmatpush1.bf16.xpose.msra.mxu0 0
    %667 = vmatprep.subr.bf16.mxu0 0
    %668 = vmatpush1.bf16.xpose.msra.mxu0 0
    %669 = vmatprep.subr.bf16.mxu0 0
    %670 = vmatpush1.bf16.xpose.msra.mxu0 0
    %671 = vmatprep.subr.bf16.mxu0 0
    %672 = vmatpush1.bf16.xpose.msra.mxu0 0
    %673 = vmatprep.subr.bf16.mxu0 0
    %674 = vmatpush1.bf16.xpose.msra.mxu0 0
    %675 = vmatprep.subr.bf16.mxu0 0
    %676 = vmatpush1.bf16.xpose.msra.mxu0 0
    %677 = vmatprep.subr.bf16.mxu0 0
    %678 = vmatpush1.bf16.xpose.msra.mxu0 0
    %679 = vmatprep.subr.bf16.mxu0 0
    %680 = vmatpush1.bf16.xpose.msra.mxu0 0
    %681 = vmatprep.mubr.bf16.mxu0 0
    %682 = vmatmul.mubr.bf16.gmra.mrb[0].mxu0 %v644
    %v683 = vpop.f32.mrb[0].mxu0
    %v684 = vadd.f32 0.0, %v683
    %v685 = vpop.f32.mrb[0].mxu0
    %v686 = vpop.f32.mrb[0].mxu0
    %v687 = vpop.f32.mrb[0].mxu0
    %688 = vdwg.mxu0
    %v689 = vsel %vm143, %v634, -inf
    %690 = vmax.xlane.f32.xlu0 %v689
    %v691 = vpop.xlane.xlu0 %690
    %v692 = vsel %vm143, %v684, -inf
    %693 = vmax.xlane.f32.xlu0 %v692
    %v694 = vpop.xlane.xlu0 %693
    %v695 = vsub.f32 %v634, %v691
    %v696 = vsub.f32 %v684, %v694
    %v697 = vmul.f32 %v695, 1.442695
    %v698 = vpow.pop %v697
    %v699 = vmul.f32 %v696, 1.442695
    %v700 = vpow.pop %v699
    %v701 = vsel %vm143, %v698, 0.0
    %702 = vadd.xlane.f32.xlu0 %v701
    %v703 = vpop.xlane.xlu0 %702
    %v704 = vsel %vm143, %v700, 0.0
    %705 = vadd.xlane.f32.xlu0 %v704
    %v706 = vpop.xlane.xlu0 %705
    %v707 = vrcp.pop %v703
    %v708 = vrcp.pop %v706
    %v709 = vmul.f32 %v698, %v707
    %v710 = vmul.f32 %v700, %v708
    %v711 = vpack.c.bf16 %v709, %v709
    %v712 = vpack.c.bf16 %v710, %v710
    %713 = vrot.lane.b32.xlu0 %v138, 48
    %v714 = vpop.permute.xlu0 %713
    %v716 = vsel %vm143, %v711, 0
    %v719 = vsel %vm268, %v714, 0
    %721 = vmatprep.subr.bf16.mxu0 0
    %722 = vmatpush1.bf16.msra.mxu0 %v719
    %723 = vmatprep.subr.bf16.mxu0 0
    %724 = vmatpush1.bf16.msra.mxu0 0
    %725 = vmatprep.subr.bf16.mxu0 0
    %726 = vmatpush1.bf16.msra.mxu0 0
    %727 = vmatprep.subr.bf16.mxu0 0
    %728 = vmatpush1.bf16.msra.mxu0 0
    %729 = vmatprep.subr.bf16.mxu0 0
    %730 = vmatpush1.bf16.msra.mxu0 0
    %731 = vmatprep.subr.bf16.mxu0 0
    %732 = vmatpush1.bf16.msra.mxu0 0
    %733 = vmatprep.subr.bf16.mxu0 0
    %734 = vmatpush1.bf16.msra.mxu0 0
    %735 = vmatprep.subr.bf16.mxu0 0
    %736 = vmatpush1.bf16.msra.mxu0 0
    %737 = vmatprep.subr.bf16.mxu0 0
    %738 = vmatpush1.bf16.msra.mxu0 0
    %739 = vmatprep.subr.bf16.mxu0 0
    %740 = vmatpush1.bf16.msra.mxu0 0
    %741 = vmatprep.subr.bf16.mxu0 0
    %742 = vmatpush1.bf16.msra.mxu0 0
    %743 = vmatprep.subr.bf16.mxu0 0
    %744 = vmatpush1.bf16.msra.mxu0 0
    %745 = vmatprep.subr.bf16.mxu0 0
    %746 = vmatpush1.bf16.msra.mxu0 0
    %747 = vmatprep.subr.bf16.mxu0 0
    %748 = vmatpush1.bf16.msra.mxu0 0
    %749 = vmatprep.subr.bf16.mxu0 0
    %750 = vmatpush1.bf16.msra.mxu0 0
    %751 = vmatprep.subr.bf16.mxu0 0
    %752 = vmatpush1.bf16.msra.mxu0 0
    %753 = vmatprep.mubr.bf16.mxu0 0
    %754 = vmatmul.mubr.bf16.gmra.mrb[0].mxu0 %v716
    %v755 = vpop.f32.mrb[0].mxu0
    %v756 = vadd.f32 0.0, %v755
    %v757 = vpop.f32.mrb[0].mxu0
    %v758 = vpop.f32.mrb[0].mxu0
    %v759 = vpop.f32.mrb[0].mxu0
    %760 = vdwg.mxu0
    %761 = vrot.lane.b32.xlu0 %v139, 48
    %v762 = vpop.permute.xlu0 %761
    %v764 = vsel %vm143, %v712, 0
    %v767 = vsel %vm268, %v762, 0
    %769 = vmatprep.subr.bf16.mxu0 0
    %770 = vmatpush1.bf16.msra.mxu0 %v767
    %771 = vmatprep.subr.bf16.mxu0 0
    %772 = vmatpush1.bf16.msra.mxu0 0
    %773 = vmatprep.subr.bf16.mxu0 0
    %774 = vmatpush1.bf16.msra.mxu0 0
    %775 = vmatprep.subr.bf16.mxu0 0
    %776 = vmatpush1.bf16.msra.mxu0 0
    %777 = vmatprep.subr.bf16.mxu0 0
    %778 = vmatpush1.bf16.msra.mxu0 0
    %779 = vmatprep.subr.bf16.mxu0 0
    %780 = vmatpush1.bf16.msra.mxu0 0
    %781 = vmatprep.subr.bf16.mxu0 0
    %782 = vmatpush1.bf16.msra.mxu0 0
    %783 = vmatprep.subr.bf16.mxu0 0
    %784 = vmatpush1.bf16.msra.mxu0 0
    %785 = vmatprep.subr.bf16.mxu0 0
    %786 = vmatpush1.bf16.msra.mxu0 0
    %787 = vmatprep.subr.bf16.mxu0 0
    %788 = vmatpush1.bf16.msra.mxu0 0
    %789 = vmatprep.subr.bf16.mxu0 0
    %790 = vmatpush1.bf16.msra.mxu0 0
    %791 = vmatprep.subr.bf16.mxu0 0
    %792 = vmatpush1.bf16.msra.mxu0 0
    %793 = vmatprep.subr.bf16.mxu0 0
    %794 = vmatpush1.bf16.msra.mxu0 0
    %795 = vmatprep.subr.bf16.mxu0 0
    %796 = vmatpush1.bf16.msra.mxu0 0
    %797 = vmatprep.subr.bf16.mxu0 0
    %798 = vmatpush1.bf16.msra.mxu0 0
    %799 = vmatprep.subr.bf16.mxu0 0
    %800 = vmatpush1.bf16.msra.mxu0 0
    %801 = vmatprep.mubr.bf16.mxu0 0
    %802 = vmatmul.mubr.bf16.gmra.mrb[0].mxu0 %v764
    %v803 = vpop.f32.mrb[0].mxu0
    %v804 = vadd.f32 0.0, %v803
    %v805 = vpop.f32.mrb[0].mxu0
    %v806 = vpop.f32.mrb[0].mxu0
    %v807 = vpop.f32.mrb[0].mxu0
    %808 = vdwg.mxu0
    %v809 = vpack.c.bf16 %v804, %v756
    %811 = vrot.lane.b32.xlu0 %v809, 16
    %v812 = vpop.permute.xlu0 %811
    %vm814 = vcmask 195712
    %815 = vst.msk [vmem:[#allocation2] sm:$0xff] %vm814, %v812
    %816 = vrot.lane.b32.xlu0 %v138, 104
    %v817 = vpop.permute.xlu0 %816
    %818 = vrot.lane.b32.xlu0 %v138, 72
    %v819 = vpop.permute.xlu0 %818
    %v821 = vsel %vm143, %v817, 0
    %v824 = vsel %vm143, %v819, 0
    %826 = vmatprep.subr.bf16.mxu0 0
    %827 = vmatpush1.bf16.xpose.msra.mxu0 %v824
    %828 = vmatprep.subr.bf16.mxu0 0
    %829 = vmatpush1.bf16.xpose.msra.mxu0 0
    %830 = vmatprep.subr.bf16.mxu0 0
    %831 = vmatpush1.bf16.xpose.msra.mxu0 0
    %832 = vmatprep.subr.bf16.mxu0 0
    %833 = vmatpush1.bf16.xpose.msra.mxu0 0
    %834 = vmatprep.subr.bf16.mxu0 0
    %835 = vmatpush1.bf16.xpose.msra.mxu0 0
    %836 = vmatprep.subr.bf16.mxu0 0
    %837 = vmatpush1.bf16.xpose.msra.mxu0 0
    %838 = vmatprep.subr.bf16.mxu0 0
    %839 = vmatpush1.bf16.xpose.msra.mxu0 0
    %840 = vmatprep.subr.bf16.mxu0 0
    %841 = vmatpush1.bf16.xpose.msra.mxu0 0
    %842 = vmatprep.subr.bf16.mxu0 0
    %843 = vmatpush1.bf16.xpose.msra.mxu0 0
    %844 = vmatprep.subr.bf16.mxu0 0
    %845 = vmatpush1.bf16.xpose.msra.mxu0 0
    %846 = vmatprep.subr.bf16.mxu0 0
    %847 = vmatpush1.bf16.xpose.msra.mxu0 0
    %848 = vmatprep.subr.bf16.mxu0 0
    %849 = vmatpush1.bf16.xpose.msra.mxu0 0
    %850 = vmatprep.subr.bf16.mxu0 0
    %851 = vmatpush1.bf16.xpose.msra.mxu0 0
    %852 = vmatprep.subr.bf16.mxu0 0
    %853 = vmatpush1.bf16.xpose.msra.mxu0 0
    %854 = vmatprep.subr.bf16.mxu0 0
    %855 = vmatpush1.bf16.xpose.msra.mxu0 0
    %856 = vmatprep.subr.bf16.mxu0 0
    %857 = vmatpush1.bf16.xpose.msra.mxu0 0
    %858 = vmatprep.mubr.bf16.mxu0 0
    %859 = vmatmul.mubr.bf16.gmra.mrb[0].mxu0 %v821
    %v860 = vpop.f32.mrb[0].mxu0
    %v861 = vadd.f32 0.0, %v860
    %v862 = vpop.f32.mrb[0].mxu0
    %v863 = vpop.f32.mrb[0].mxu0
    %v864 = vpop.f32.mrb[0].mxu0
    %865 = vdwg.mxu0
    %866 = vrot.lane.b32.xlu0 %v139, 104
    %v867 = vpop.permute.xlu0 %866
    %868 = vrot.lane.b32.xlu0 %v139, 72
    %v869 = vpop.permute.xlu0 %868
    %v871 = vsel %vm143, %v867, 0
    %v874 = vsel %vm143, %v869, 0
    %876 = vmatprep.subr.bf16.mxu0 0
    %877 = vmatpush1.bf16.xpose.msra.mxu0 %v874
    %878 = vmatprep.subr.bf16.mxu0 0
    %879 = vmatpush1.bf16.xpose.msra.mxu0 0
    %880 = vmatprep.subr.bf16.mxu0 0
    %881 = vmatpush1.bf16.xpose.msra.mxu0 0
    %882 = vmatprep.subr.bf16.mxu0 0
    %883 = vmatpush1.bf16.xpose.msra.mxu0 0
    %884 = vmatprep.subr.bf16.mxu0 0
    %885 = vmatpush1.bf16.xpose.msra.mxu0 0
    %886 = vmatprep.subr.bf16.mxu0 0
    %887 = vmatpush1.bf16.xpose.msra.mxu0 0
    %888 = vmatprep.subr.bf16.mxu0 0
    %889 = vmatpush1.bf16.xpose.msra.mxu0 0
    %890 = vmatprep.subr.bf16.mxu0 0
    %891 = vmatpush1.bf16.xpose.msra.mxu0 0
    %892 = vmatprep.subr.bf16.mxu0 0
    %893 = vmatpush1.bf16.xpose.msra.mxu0 0
    %894 = vmatprep.subr.bf16.mxu0 0
    %895 = vmatpush1.bf16.xpose.msra.mxu0 0
    %896 = vmatprep.subr.bf16.mxu0 0
    %897 = vmatpush1.bf16.xpose.msra.mxu0 0
    %898 = vmatprep.subr.bf16.mxu0 0
    %899 = vmatpush1.bf16.xpose.msra.mxu0 0
    %900 = vmatprep.subr.bf16.mxu0 0
    %901 = vmatpush1.bf16.xpose.msra.mxu0 0
    %902 = vmatprep.subr.bf16.mxu0 0
    %903 = vmatpush1.bf16.xpose.msra.mxu0 0
    %904 = vmatprep.subr.bf16.mxu0 0
    %905 = vmatpush1.bf16.xpose.msra.mxu0 0
    %906 = vmatprep.subr.bf16.mxu0 0
    %907 = vmatpush1.bf16.xpose.msra.mxu0 0
    %908 = vmatprep.mubr.bf16.mxu0 0
    %909 = vmatmul.mubr.bf16.gmra.mrb[0].mxu0 %v871
    %v910 = vpop.f32.mrb[0].mxu0
    %v911 = vadd.f32 0.0, %v910
    %v912 = vpop.f32.mrb[0].mxu0
    %v913 = vpop.f32.mrb[0].mxu0
    %v914 = vpop.f32.mrb[0].mxu0
    %915 = vdwg.mxu0
    %v916 = vsel %vm143, %v861, -inf
    %917 = vmax.xlane.f32.xlu0 %v916
    %v918 = vpop.xlane.xlu0 %917
    %v919 = vsel %vm143, %v911, -inf
    %920 = vmax.xlane.f32.xlu0 %v919
    %v921 = vpop.xlane.xlu0 %920
    %v922 = vsub.f32 %v861, %v918
    %v923 = vsub.f32 %v911, %v921
    %v924 = vmul.f32 %v922, 1.442695
    %v925 = vpow.pop %v924
    %v926 = vmul.f32 %v923, 1.442695
    %v927 = vpow.pop %v926
    %v928 = vsel %vm143, %v925, 0.0
    %929 = vadd.xlane.f32.xlu0 %v928
    %v930 = vpop.xlane.xlu0 %929
    %v931 = vsel %vm143, %v927, 0.0
    %932 = vadd.xlane.f32.xlu0 %v931
    %v933 = vpop.xlane.xlu0 %932
    %v934 = vrcp.pop %v930
    %v935 = vrcp.pop %v933
    %v936 = vmul.f32 %v925, %v934
    %v937 = vmul.f32 %v927, %v935
    %v938 = vpack.c.bf16 %v936, %v936
    %v939 = vpack.c.bf16 %v937, %v937
    %940 = vrot.lane.b32.xlu0 %v138, 40
    %v941 = vpop.permute.xlu0 %940
    %v943 = vsel %vm143, %v938, 0
    %v946 = vsel %vm268, %v941, 0
    %948 = vmatprep.subr.bf16.mxu0 0
    %949 = vmatpush1.bf16.msra.mxu0 %v946
    %950 = vmatprep.subr.bf16.mxu0 0
    %951 = vmatpush1.bf16.msra.mxu0 0
    %952 = vmatprep.subr.bf16.mxu0 0
    %953 = vmatpush1.bf16.msra.mxu0 0
    %954 = vmatprep.subr.bf16.mxu0 0
    %955 = vmatpush1.bf16.msra.mxu0 0
    %956 = vmatprep.subr.bf16.mxu0 0
    %957 = vmatpush1.bf16.msra.mxu0 0
    %958 = vmatprep.subr.bf16.mxu0 0
    %959 = vmatpush1.bf16.msra.mxu0 0
    %960 = vmatprep.subr.bf16.mxu0 0
    %961 = vmatpush1.bf16.msra.mxu0 0
    %962 = vmatprep.subr.bf16.mxu0 0
    %963 = vmatpush1.bf16.msra.mxu0 0
    %964 = vmatprep.subr.bf16.mxu0 0
    %965 = vmatpush1.bf16.msra.mxu0 0
    %966 = vmatprep.subr.bf16.mxu0 0
    %967 = vmatpush1.bf16.msra.mxu0 0
    %968 = vmatprep.subr.bf16.mxu0 0
    %969 = vmatpush1.bf16.msra.mxu0 0
    %970 = vmatprep.subr.bf16.mxu0 0
    %971 = vmatpush1.bf16.msra.mxu0 0
    %972 = vmatprep.subr.bf16.mxu0 0
    %973 = vmatpush1.bf16.msra.mxu0 0
    %974 = vmatprep.subr.bf16.mxu0 0
    %975 = vmatpush1.bf16.msra.mxu0 0
    %976 = vmatprep.subr.bf16.mxu0 0
    %977 = vmatpush1.bf16.msra.mxu0 0
    %978 = vmatprep.subr.bf16.mxu0 0
    %979 = vmatpush1.bf16.msra.mxu0 0
    %980 = vmatprep.mubr.bf16.mxu0 0
    %981 = vmatmul.mubr.bf16.gmra.mrb[0].mxu0 %v943
    %v982 = vpop.f32.mrb[0].mxu0
    %v983 = vadd.f32 0.0, %v982
    %v984 = vpop.f32.mrb[0].mxu0
    %v985 = vpop.f32.mrb[0].mxu0
    %v986 = vpop.f32.mrb[0].mxu0
    %987 = vdwg.mxu0
    %988 = vrot.lane.b32.xlu0 %v139, 40
    %v989 = vpop.permute.xlu0 %988
    %v991 = vsel %vm143, %v939, 0
    %v994 = vsel %vm268, %v989, 0
    %996 = vmatprep.subr.bf16.mxu0 0
    %997 = vmatpush1.bf16.msra.mxu0 %v994
    %998 = vmatprep.subr.bf16.mxu0 0
    %999 = vmatpush1.bf16.msra.mxu0 0
    %1000 = vmatprep.subr.bf16.mxu0 0
    %1001 = vmatpush1.bf16.msra.mxu0 0
    %1002 = vmatprep.subr.bf16.mxu0 0
    %1003 = vmatpush1.bf16.msra.mxu0 0
    %1004 = vmatprep.subr.bf16.mxu0 0
    %1005 = vmatpush1.bf16.msra.mxu0 0
    %1006 = vmatprep.subr.bf16.mxu0 0
    %1007 = vmatpush1.bf16.msra.mxu0 0
    %1008 = vmatprep.subr.bf16.mxu0 0
    %1009 = vmatpush1.bf16.msra.mxu0 0
    %1010 = vmatprep.subr.bf16.mxu0 0
    %1011 = vmatpush1.bf16.msra.mxu0 0
    %1012 = vmatprep.subr.bf16.mxu0 0
    %1013 = vmatpush1.bf16.msra.mxu0 0
    %1014 = vmatprep.subr.bf16.mxu0 0
    %1015 = vmatpush1.bf16.msra.mxu0 0
    %1016 = vmatprep.subr.bf16.mxu0 0
    %1017 = vmatpush1.bf16.msra.mxu0 0
    %1018 = vmatprep.subr.bf16.mxu0 0
    %1019 = vmatpush1.bf16.msra.mxu0 0
    %1020 = vmatprep.subr.bf16.mxu0 0
    %1021 = vmatpush1.bf16.msra.mxu0 0
    %1022 = vmatprep.subr.bf16.mxu0 0
    %1023 = vmatpush1.bf16.msra.mxu0 0
    %1024 = vmatprep.subr.bf16.mxu0 0
    %1025 = vmatpush1.bf16.msra.mxu0 0
    %1026 = vmatprep.subr.bf16.mxu0 0
    %1027 = vmatpush1.bf16.msra.mxu0 0
    %1028 = vmatprep.mubr.bf16.mxu0 0
    %1029 = vmatmul.mubr.bf16.gmra.mrb[0].mxu0 %v991
    %v1030 = vpop.f32.mrb[0].mxu0
    %v1031 = vadd.f32 0.0, %v1030
    %v1032 = vpop.f32.mrb[0].mxu0
    %v1033 = vpop.f32.mrb[0].mxu0
    %v1034 = vpop.f32.mrb[0].mxu0
    %1035 = vdwg.mxu0
    %v1036 = vpack.c.bf16 %v1031, %v983
    %1038 = vrot.lane.b32.xlu0 %v1036, 24
    %v1039 = vpop.permute.xlu0 %1038
    %vm1041 = vcmask 261312
    %1042 = vst.msk [vmem:[#allocation2] sm:$0xff] %vm1041, %v1039
    %v1043 = vld [vmem:[#allocation2] sm:$0xff]
    %v1044 = vld [vmem:[#allocation8] sm:$0xf]
    %v1045 = vld [vmem:[#allocation8 + $0x4] sm:$0xf]
    %v1046 = vld [vmem:[#allocation8 + $0x8] sm:$0xf]
    %v1047 = vld [vmem:[#allocation8 + $0xc] sm:$0xf]
    %v1048 = vld [vmem:[%s4] sm:$0x1]
    %v1050 = vlaneseq
    %v1051 = vshrl.u32 %v1050, 7
    %v1052 = vsub.s32 0, %v1051
    %v1053 = vrot.slane %v1048, %v1052
    %v1059 = vunpack.c.l.b16 %v1044
    %v1060 = vunpack.c.l.b16 %v1045
    %v1061 = vunpack.c.l.b16 %v1046
    %v1062 = vunpack.c.l.b16 %v1047
    %v1063 = vpack.c.b16 %v1060, %v1059
    %v1064 = vpack.c.b16 %v1062, %v1061
    %v1068 = vsel %vm93, %v1043, 0
    %1070 = vmatprep.subr.bf16.mxu0 0
    %1071 = vmatpush1.bf16.msra.mxu0 %v1063
    %1072 = vmatprep.subr.bf16.mxu0 0
    %1073 = vmatpush1.bf16.msra.mxu0 %v1064
    %1074 = vmatprep.subr.bf16.mxu0 0
    %1075 = vmatpush1.bf16.msra.mxu0 0
    %1076 = vmatprep.subr.bf16.mxu0 0
    %1077 = vmatpush1.bf16.msra.mxu0 0
    %1078 = vmatprep.subr.bf16.mxu0 0
    %1079 = vmatpush1.bf16.msra.mxu0 0
    %1080 = vmatprep.subr.bf16.mxu0 0
    %1081 = vmatpush1.bf16.msra.mxu0 0
    %1082 = vmatprep.subr.bf16.mxu0 0
    %1083 = vmatpush1.bf16.msra.mxu0 0
    %1084 = vmatprep.subr.bf16.mxu0 0
    %1085 = vmatpush1.bf16.msra.mxu0 0
    %1086 = vmatprep.subr.bf16.mxu0 0
    %1087 = vmatpush1.bf16.msra.mxu0 0
    %1088 = vmatprep.subr.bf16.mxu0 0
    %1089 = vmatpush1.bf16.msra.mxu0 0
    %1090 = vmatprep.subr.bf16.mxu0 0
    %1091 = vmatpush1.bf16.msra.mxu0 0
    %1092 = vmatprep.subr.bf16.mxu0 0
    %1093 = vmatpush1.bf16.msra.mxu0 0
    %1094 = vmatprep.subr.bf16.mxu0 0
    %1095 = vmatpush1.bf16.msra.mxu0 0
    %1096 = vmatprep.subr.bf16.mxu0 0
    %1097 = vmatpush1.bf16.msra.mxu0 0
    %1098 = vmatprep.subr.bf16.mxu0 0
    %1099 = vmatpush1.bf16.msra.mxu0 0
    %1100 = vmatprep.subr.bf16.mxu0 0
    %1101 = vmatpush1.bf16.msra.mxu0 0
    %1102 = vmatprep.mubr.bf16.mxu0 0
    %1103 = vmatmul.mubr.bf16.gmra.mrb[0].mxu0 %v1068
    %v1104 = vpop.f32.mrb[0].mxu0
    %v1105 = vadd.f32 %v1053, %v1104
    %v1106 = vpop.f32.mrb[0].mxu0
    %v1107 = vpop.f32.mrb[0].mxu0
    %v1108 = vadd.f32 %v1053, %v1107
    %v1109 = vpop.f32.mrb[0].mxu0
    %1110 = vdwg.mxu0
    %1111 = vst.msk [vmem:[#allocation9] sm:$0xff] %vm93, %v1105
    %1112 = vst.msk [vmem:[#allocation9 + $0x8] sm:$0xff] %vm93, %v1108
    // Predicated region
    $region34: #{tpu_custom_call.1} parent=1 // pred_check
      _
    $region35: #{tpu_custom_call.1} parent=1 // pred_check_branch
      %1114 = sbr.rel (0) target = $region37
    $region36: #{tpu_custom_call.1} parent=1 // pred_region
      %s1116 = ssub.s32 256, 256
      %1117 = vsyncadd [#allocation5], %s1116
      %s1118 = sshll.u32 [#allocation9], 4
      %s1119 = int_to_ptr.vmem [resolvable:$true] %s1118
      %1124 = dma.vmem_to_hbm [thread:$0]  %s1119, 256, %s5, [#allocation5], 128, 128, 8
    $region37: #{tpu_custom_call.1} parent=1 // pred_fallthru
      _
    // Predicated region
    $region38: #{tpu_custom_call.1} parent=1 // pred_check
      _
    $region39: #{tpu_custom_call.1} parent=1 // pred_check_branch
      %1126 = sbr.rel (0) target = $region41
    $region40: #{tpu_custom_call.1} parent=1 // pred_region
      %1127 = dma.done [#allocation5], 256
    $region41: #{tpu_custom_call.1} parent=1 // pred_fallthru
      _
    %1128 = vsyncpa [#allocation4], 1
    %1129 = vsyncpa [#allocation7], 1
    %1130 = vsyncpa [#allocation5], 1

// kernel: tpu_custom_call.1
$region0: #{tpu_custom_call.1}
  #allocation0 [shape = 'u32[]', space=smem, size = 0x4, offset = 0x4, fixed_abs, tag = 'smem constant byte address 0x4 - core index']
  #allocation1 [shape = 'u32[144,128]{1,0:T(1,128)}', space=vmem, size = 0x12000, scoped, tag = 'internal scratch']
  #allocation2 [shape = 'bf16[16,32]{1,0:T(16,128)(2,1)}', space=vmem, size = 0x1000, scoped, tag = 'scratch operand']
  %s0 = inlined_call_operand.hbm [shape: bf16[2,8,32], index: 0, kind: input, shape index: {}]
  %s1 = inlined_call_operand.hbm [shape: bf16[32,96], index: 1, kind: input, shape index: {}]
  %s2 = inlined_call_operand.vmem [shape: f32[1,96], index: 2, kind: input, shape index: {}]
  %s3 = inlined_call_operand.hbm [shape: bf16[32,32], index: 3, kind: input, shape index: {}]
  %s4 = inlined_call_operand.vmem [shape: f32[1,32], index: 4, kind: input, shape index: {}]
  %s5 = inlined_call_operand.hbm [shape: f32[2,8,32], index: 5, kind: output, shape index: {}]
  %s6 = sld [smem:[#allocation0]]
  $region42: #{tpu_custom_call.1} parent=0
    _
  %s8 = ssub.s32 1, %s6
  %s9 = scalar_select 0, %s8, %s6
  $region1: #{tpu_custom_call.1} parent=0
    #allocation3 [shape = 'u8[4096]{0}', space=vmem, size = 0x1000, scoped, tag = 'input window, operand 0, single buffered']
    #allocation4 [shape = 's32[1]{0}', space=sflag, size = 0x4, scoped, tag = 'scoped memory for tpu_custom_call.1']
    #allocation5 [shape = 's32[1]{0}', space=sflag, size = 0x4, scoped, tag = 'scoped memory for tpu_custom_call.1']
    #allocation6 [shape = 'u8[8192]{0}', space=vmem, size = 0x2000, scoped, tag = 'input window, operand 1, single buffered']
    #allocation7 [shape = 's32[1]{0}', space=sflag, size = 0x4, scoped, tag = 'scoped memory for tpu_custom_call.1']
    #allocation8 [shape = 'u8[8192]{0}', space=vmem, size = 0x2000, scoped, tag = 'input window, operand 3, single buffered']
    #allocation9 [shape = 'u8[8192]{0}', space=vmem, size = 0x2000, scoped, tag = 'output window, operand 0, single buffered']
    %10 = vsyncpa [#allocation4], 0
    %11 = vsyncpa [#allocation7], 0
    %12 = vsyncpa [#allocation5], 0
    // Predicated region
    $region2: #{tpu_custom_call.1} parent=1 // pred_check
      _
    $region3: #{tpu_custom_call.1} parent=1 // pred_check_branch
      %14 = sbr.rel (0) target = $region5
    $region4: #{tpu_custom_call.1} parent=1 // pred_region
      %s16 = ssub.s32 128, 128
      %17 = vsyncadd [#allocation4], %s16
      %s18 = sshll.u32 [#allocation3], 4
      %s19 = int_to_ptr.vmem [resolvable:$true] %s18
      %24 = dma.hbm_to_vmem [thread:$0]  %s0, 128, %s19, [#allocation4], 64, 64, 4
    $region5: #{tpu_custom_call.1} parent=1 // pred_fallthru
      _
    // Predicated region
    $region6: #{tpu_custom_call.1} parent=1 // pred_check
      _
    $region7: #{tpu_custom_call.1} parent=1 // pred_check_branch
      %26 = sbr.rel (0) target = $region9
    $region8: #{tpu_custom_call.1} parent=1 // pred_region
      %s28 = ssub.s32 256, 256
      %29 = vsyncadd [#allocation7], %s28
      %s30 = sshll.u32 [#allocation6], 4
      %s31 = int_to_ptr.vmem [resolvable:$true] %s30
      %36 = dma.hbm_to_vmem [thread:$0]  %s1, 256, %s31, [#allocation7], 64, 64, 4
    $region9: #{tpu_custom_call.1} parent=1 // pred_fallthru
      _
    // Predicated region
    $region10: #{tpu_custom_call.1} parent=1 // pred_check
      _
    $region11: #{tpu_custom_call.1} parent=1 // pred_check_branch
      %38 = sbr.rel (0) target = $region13
    $region12: #{tpu_custom_call.1} parent=1 // pred_region
      _
    $region13: #{tpu_custom_call.1} parent=1 // pred_fallthru
      _
    // Predicated region
    $region14: #{tpu_custom_call.1} parent=1 // pred_check
      _
    $region15: #{tpu_custom_call.1} parent=1 // pred_check_branch
      %40 = sbr.rel (0) target = $region17
    $region16: #{tpu_custom_call.1} parent=1 // pred_region
      %s42 = ssub.s32 256, 256
      %43 = vsyncadd [#allocation7], %s42
      %s44 = sshll.u32 [#allocation8], 4
      %s45 = int_to_ptr.vmem [resolvable:$true] %s44
      %50 = dma.hbm_to_vmem [thread:$0]  %s3, 256, %s45, [#allocation7], 64, 64, 4
    $region17: #{tpu_custom_call.1} parent=1 // pred_fallthru
      _
    // Predicated region
    $region18: #{tpu_custom_call.1} parent=1 // pred_check
      _
    $region19: #{tpu_custom_call.1} parent=1 // pred_check_branch
      %52 = sbr.rel (0) target = $region21
    $region20: #{tpu_custom_call.1} parent=1 // pred_region
      _
    $region21: #{tpu_custom_call.1} parent=1 // pred_fallthru
      _
    // Predicated region
    $region22: #{tpu_custom_call.1} parent=1 // pred_check
      _
    $region23: #{tpu_custom_call.1} parent=1 // pred_check_branch
      %54 = sbr.rel (0) target = $region25
    $region24: #{tpu_custom_call.1} parent=1 // pred_region
      %55 = dma.done [#allocation4], 128
    $region25: #{tpu_custom_call.1} parent=1 // pred_fallthru
      _
    // Predicated region
    $region26: #{tpu_custom_call.1} parent=1 // pred_check
      _
    $region27: #{tpu_custom_call.1} parent=1 // pred_check_branch
      %57 = sbr.rel (0) target = $region29
    $region28: #{tpu_custom_call.1} parent=1 // pred_region
      %58 = dma.done [#allocation7], 256
    $region29: #{tpu_custom_call.1} parent=1 // pred_fallthru
      _
    // Predicated region
    $region30: #{tpu_custom_call.1} parent=1 // pred_check
      _
    $region31: #{tpu_custom_call.1} parent=1 // pred_check_branch
      %60 = sbr.rel (0) target = $region33
    $region32: #{tpu_custom_call.1} parent=1 // pred_region
      %61 = dma.done [#allocation7], 256
    $region33: #{tpu_custom_call.1} parent=1 // pred_fallthru
      _
    %v63 = vld [vmem:[#allocation3] sm:$0xf]
    %v64 = vld [vmem:[#allocation3 + $0x4] sm:$0xf]
    %v65 = vld [vmem:[#allocation6] sm:$0xf]
    %v66 = vld [vmem:[#allocation6 + $0x4] sm:$0xf]
    %v67 = vld [vmem:[#allocation6 + $0x8] sm:$0xf]
    %v68 = vld [vmem:[#allocation6 + $0xc] sm:$0xf]
    %v69 = vld [vmem:[%s2] sm:$0x1]
    %v71 = vlaneseq
    %v72 = vshrl.u32 %v71, 7
    %v73 = vsub.s32 0, %v72
    %v74 = vrot.slane %v69, %v73
    %v78 = vunpack.c.l.b16 %v63
    %v79 = vunpack.c.l.b16 %v64
    %v80 = vpack.c.b16 %v79, %v78
    %v85 = vunpack.c.l.b16 %v65
    %v86 = vunpack.c.l.b16 %v66
    %v87 = vunpack.c.l.b16 %v67
    %v88 = vunpack.c.l.b16 %v68
    %v89 = vpack.c.b16 %v86, %v85
    %v90 = vpack.c.b16 %v88, %v87
    %vm93 = vcmask 261120
    %v95 = vsel %vm93, %v80, 0
    %97 = vmatprep.subr.bf16.mxu0 0
    %98 = vmatpush1.bf16.msra.mxu0 %v89
    %99 = vmatprep.subr.bf16.mxu0 0
    %100 = vmatpush1.bf16.msra.mxu0 %v90
    %101 = vmatprep.subr.bf16.mxu0 0
    %102 = vmatpush1.bf16.msra.mxu0 0
    %103 = vmatprep.subr.bf16.mxu0 0
    %104 = vmatpush1.bf16.msra.mxu0 0
    %105 = vmatprep.subr.bf16.mxu0 0
    %106 = vmatpush1.bf16.msra.mxu0 0
    %107 = vmatprep.subr.bf16.mxu0 0
    %108 = vmatpush1.bf16.msra.mxu0 0
    %109 = vmatprep.subr.bf16.mxu0 0
    %110 = vmatpush1.bf16.msra.mxu0 0
    %111 = vmatprep.subr.bf16.mxu0 0
    %112 = vmatpush1.bf16.msra.mxu0 0
    %113 = vmatprep.subr.bf16.mxu0 0
    %114 = vmatpush1.bf16.msra.mxu0 0
    %115 = vmatprep.subr.bf16.mxu0 0
    %116 = vmatpush1.bf16.msra.mxu0 0
    %117 = vmatprep.subr.bf16.mxu0 0
    %118 = vmatpush1.bf16.msra.mxu0 0
    %119 = vmatprep.subr.bf16.mxu0 0
    %120 = vmatpush1.bf16.msra.mxu0 0
    %121 = vmatprep.subr.bf16.mxu0 0
    %122 = vmatpush1.bf16.msra.mxu0 0
    %123 = vmatprep.subr.bf16.mxu0 0
    %124 = vmatpush1.bf16.msra.mxu0 0
    %125 = vmatprep.subr.bf16.mxu0 0
    %126 = vmatpush1.bf16.msra.mxu0 0
    %127 = vmatprep.subr.bf16.mxu0 0
    %128 = vmatpush1.bf16.msra.mxu0 0
    %129 = vmatprep.mubr.bf16.mxu0 0
    %130 = vmatmul.mubr.bf16.gmra.mrb[0].mxu0 %v95
    %v131 = vpop.f32.mrb[0].mxu0
    %v132 = vadd.f32 %v74, %v131
    %v133 = vpop.f32.mrb[0].mxu0
    %v134 = vpop.f32.mrb[0].mxu0
    %v135 = vadd.f32 %v74, %v134
    %v136 = vpop.f32.mrb[0].mxu0
    %137 = vdwg.mxu0
    %v138 = vpack.c.bf16 %v132, %v132
    %v139 = vpack.c.bf16 %v135, %v135
    %141 = vrot.lane.b32.xlu0 %v138, 96
    %v142 = vpop.permute.xlu0 %141
    %vm143 = vcmask 64512
    %v145 = vsel %vm143, %v138, 0
    %v148 = vsel %vm143, %v142, 0
    %150 = vmatprep.subr.bf16.mxu0 0
    %151 = vmatpush1.bf16.xpose.msra.mxu0 %v148
    %152 = vmatprep.subr.bf16.mxu0 0
    %153 = vmatpush1.bf16.xpose.msra.mxu0 0
    %154 = vmatprep.subr.bf16.mxu0 0
    %155 = vmatpush1.bf16.xpose.msra.mxu0 0
    %156 = vmatprep.subr.bf16.mxu0 0
    %157 = vmatpush1.bf16.xpose.msra.mxu0 0
    %158 = vmatprep.subr.bf16.mxu0 0
    %159 = vmatpush1.bf16.xpose.msra.mxu0 0
    %160 = vmatprep.subr.bf16.mxu0 0
    %161 = vmatpush1.bf16.xpose.msra.mxu0 0
    %162 = vmatprep.subr.bf16.mxu0 0
    %163 = vmatpush1.bf16.xpose.msra.mxu0 0
    %164 = vmatprep.subr.bf16.mxu0 0
    %165 = vmatpush1.bf16.xpose.msra.mxu0 0
    %166 = vmatprep.subr.bf16.mxu0 0
    %167 = vmatpush1.bf16.xpose.msra.mxu0 0
    %168 = vmatprep.subr.bf16.mxu0 0
    %169 = vmatpush1.bf16.xpose.msra.mxu0 0
    %170 = vmatprep.subr.bf16.mxu0 0
    %171 = vmatpush1.bf16.xpose.msra.mxu0 0
    %172 = vmatprep.subr.bf16.mxu0 0
    %173 = vmatpush1.bf16.xpose.msra.mxu0 0
    %174 = vmatprep.subr.bf16.mxu0 0
    %175 = vmatpush1.bf16.xpose.msra.mxu0 0
    %176 = vmatprep.subr.bf16.mxu0 0
    %177 = vmatpush1.bf16.xpose.msra.mxu0 0
    %178 = vmatprep.subr.bf16.mxu0 0
    %179 = vmatpush1.bf16.xpose.msra.mxu0 0
    %180 = vmatprep.subr.bf16.mxu0 0
    %181 = vmatpush1.bf16.xpose.msra.mxu0 0
    %182 = vmatprep.mubr.bf16.mxu0 0
    %183 = vmatmul.mubr.bf16.gmra.mrb[0].mxu0 %v145
    %v184 = vpop.f32.mrb[0].mxu0
    %v185 = vadd.f32 0.0, %v184
    %v186 = vpop.f32.mrb[0].mxu0
    %v187 = vpop.f32.mrb[0].mxu0
    %v188 = vpop.f32.mrb[0].mxu0
    %189 = vdwg.mxu0
    %191 = vrot.lane.b32.xlu0 %v139, 96
    %v192 = vpop.permute.xlu0 %191
    %v194 = vsel %vm143, %v139, 0
    %v197 = vsel %vm143, %v192, 0
    %199 = vmatprep.subr.bf16.mxu0 0
    %200 = vmatpush1.bf16.xpose.msra.mxu0 %v197
    %201 = vmatprep.subr.bf16.mxu0 0
    %202 = vmatpush1.bf16.xpose.msra.mxu0 0
    %203 = vmatprep.subr.bf16.mxu0 0
    %204 = vmatpush1.bf16.xpose.msra.mxu0 0
    %205 = vmatprep.subr.bf16.mxu0 0
    %206 = vmatpush1.bf16.xpose.msra.mxu0 0
    %207 = vmatprep.subr.bf16.mxu0 0
    %208 = vmatpush1.bf16.xpose.msra.mxu0 0
    %209 = vmatprep.subr.bf16.mxu0 0
    %210 = vmatpush1.bf16.xpose.msra.mxu0 0
    %211 = vmatprep.subr.bf16.mxu0 0
    %212 = vmatpush1.bf16.xpose.msra.mxu0 0
    %213 = vmatprep.subr.bf16.mxu0 0
    %214 = vmatpush1.bf16.xpose.msra.mxu0 0
    %215 = vmatprep.subr.bf16.mxu0 0
    %216 = vmatpush1.bf16.xpose.msra.mxu0 0
    %217 = vmatprep.subr.bf16.mxu0 0
    %218 = vmatpush1.bf16.xpose.msra.mxu0 0
    %219 = vmatprep.subr.bf16.mxu0 0
    %220 = vmatpush1.bf16.xpose.msra.mxu0 0
    %221 = vmatprep.subr.bf16.mxu0 0
    %222 = vmatpush1.bf16.xpose.msra.mxu0 0
    %223 = vmatprep.subr.bf16.mxu0 0
    %224 = vmatpush1.bf16.xpose.msra.mxu0 0
    %225 = vmatprep.subr.bf16.mxu0 0
    %226 = vmatpush1.bf16.xpose.msra.mxu0 0
    %227 = vmatprep.subr.bf16.mxu0 0
    %228 = vmatpush1.bf16.xpose.msra.mxu0 0
    %229 = vmatprep.subr.bf16.mxu0 0
    %230 = vmatpush1.bf16.xpose.msra.mxu0 0
    %231 = vmatprep.mubr.bf16.mxu0 0
    %232 = vmatmul.mubr.bf16.gmra.mrb[0].mxu0 %v194
    %v233 = vpop.f32.mrb[0].mxu0
    %v234 = vadd.f32 0.0, %v233
    %v235 = vpop.f32.mrb[0].mxu0
    %v236 = vpop.f32.mrb[0].mxu0
    %v237 = vpop.f32.mrb[0].mxu0
    %238 = vdwg.mxu0
    %v239 = vsel %vm143, %v185, -inf
    %240 = vmax.xlane.f32.xlu0 %v239
    %v241 = vpop.xlane.xlu0 %240
    %v242 = vsel %vm143, %v234, -inf
    %243 = vmax.xlane.f32.xlu0 %v242
    %v244 = vpop.xlane.xlu0 %243
    %v245 = vsub.f32 %v185, %v241
    %v246 = vsub.f32 %v234, %v244
    %v247 = vmul.f32 %v245, 1.442695
    %v248 = vpow.pop %v247
    %v249 = vmul.f32 %v246, 1.442695
    %v250 = vpow.pop %v249
    %v251 = vsel %vm143, %v248, 0.0
    %252 = vadd.xlane.f32.xlu0 %v251
    %v253 = vpop.xlane.xlu0 %252
    %v254 = vsel %vm143, %v250, 0.0
    %255 = vadd.xlane.f32.xlu0 %v254
    %v256 = vpop.xlane.xlu0 %255
    %v257 = vrcp.pop %v253
    %v258 = vrcp.pop %v256
    %v259 = vmul.f32 %v248, %v257
    %v260 = vmul.f32 %v250, %v258
    %v261 = vpack.c.bf16 %v259, %v259
    %v262 = vpack.c.bf16 %v260, %v260
    %263 = vrot.lane.b32.xlu0 %v138, 64
    %v264 = vpop.permute.xlu0 %263
    %v266 = vsel %vm143, %v261, 0
    %vm268 = vcmask 1043456
    %v270 = vsel %vm268, %v264, 0
    %272 = vmatprep.subr.bf16.mxu0 0
    %273 = vmatpush1.bf16.msra.mxu0 %v270
    %274 = vmatprep.subr.bf16.mxu0 0
    %275 = vmatpush1.bf16.msra.mxu0 0
    %276 = vmatprep.subr.bf16.mxu0 0
    %277 = vmatpush1.bf16.msra.mxu0 0
    %278 = vmatprep.subr.bf16.mxu0 0
    %279 = vmatpush1.bf16.msra.mxu0 0
    %280 = vmatprep.subr.bf16.mxu0 0
    %281 = vmatpush1.bf16.msra.mxu0 0
    %282 = vmatprep.subr.bf16.mxu0 0
    %283 = vmatpush1.bf16.msra.mxu0 0
    %284 = vmatprep.subr.bf16.mxu0 0
    %285 = vmatpush1.bf16.msra.mxu0 0
    %286 = vmatprep.subr.bf16.mxu0 0
    %287 = vmatpush1.bf16.msra.mxu0 0
    %288 = vmatprep.subr.bf16.mxu0 0
    %289 = vmatpush1.bf16.msra.mxu0 0
    %290 = vmatprep.subr.bf16.mxu0 0
    %291 = vmatpush1.bf16.msra.mxu0 0
    %292 = vmatprep.subr.bf16.mxu0 0
    %293 = vmatpush1.bf16.msra.mxu0 0
    %294 = vmatprep.subr.bf16.mxu0 0
    %295 = vmatpush1.bf16.msra.mxu0 0
    %296 = vmatprep.subr.bf16.mxu0 0
    %297 = vmatpush1.bf16.msra.mxu0 0
    %298 = vmatprep.subr.bf16.mxu0 0
    %299 = vmatpush1.bf16.msra.mxu0 0
    %300 = vmatprep.subr.bf16.mxu0 0
    %301 = vmatpush1.bf16.msra.mxu0 0
    %302 = vmatprep.subr.bf16.mxu0 0
    %303 = vmatpush1.bf16.msra.mxu0 0
    %304 = vmatprep.mubr.bf16.mxu0 0
    %305 = vmatmul.mubr.bf16.gmra.mrb[0].mxu0 %v266
    %v306 = vpop.f32.mrb[0].mxu0
    %v307 = vadd.f32 0.0, %v306
    %v308 = vpop.f32.mrb[0].mxu0
    %v309 = vpop.f32.mrb[0].mxu0
    %v310 = vpop.f32.mrb[0].mxu0
    %311 = vdwg.mxu0
    %312 = vrot.lane.b32.xlu0 %v139, 64
    %v313 = vpop.permute.xlu0 %312
    %v315 = vsel %vm143, %v262, 0
    %v318 = vsel %vm268, %v313, 0
    %320 = vmatprep.subr.bf16.mxu0 0
    %321 = vmatpush1.bf16.msra.mxu0 %v318
    %322 = vmatprep.subr.bf16.mxu0 0
    %323 = vmatpush1.bf16.msra.mxu0 0
    %324 = vmatprep.subr.bf16.mxu0 0
    %325 = vmatpush1.bf16.msra.mxu0 0
    %326 = vmatprep.subr.bf16.mxu0 0
    %327 = vmatpush1.bf16.msra.mxu0 0
    %328 = vmatprep.subr.bf16.mxu0 0
    %329 = vmatpush1.bf16.msra.mxu0 0
    %330 = vmatprep.subr.bf16.mxu0 0
    %331 = vmatpush1.bf16.msra.mxu0 0
    %332 = vmatprep.subr.bf16.mxu0 0
    %333 = vmatpush1.bf16.msra.mxu0 0
    %334 = vmatprep.subr.bf16.mxu0 0
    %335 = vmatpush1.bf16.msra.mxu0 0
    %336 = vmatprep.subr.bf16.mxu0 0
    %337 = vmatpush1.bf16.msra.mxu0 0
    %338 = vmatprep.subr.bf16.mxu0 0
    %339 = vmatpush1.bf16.msra.mxu0 0
    %340 = vmatprep.subr.bf16.mxu0 0
    %341 = vmatpush1.bf16.msra.mxu0 0
    %342 = vmatprep.subr.bf16.mxu0 0
    %343 = vmatpush1.bf16.msra.mxu0 0
    %344 = vmatprep.subr.bf16.mxu0 0
    %345 = vmatpush1.bf16.msra.mxu0 0
    %346 = vmatprep.subr.bf16.mxu0 0
    %347 = vmatpush1.bf16.msra.mxu0 0
    %348 = vmatprep.subr.bf16.mxu0 0
    %349 = vmatpush1.bf16.msra.mxu0 0
    %350 = vmatprep.subr.bf16.mxu0 0
    %351 = vmatpush1.bf16.msra.mxu0 0
    %352 = vmatprep.mubr.bf16.mxu0 0
    %353 = vmatmul.mubr.bf16.gmra.mrb[0].mxu0 %v315
    %v354 = vpop.f32.mrb[0].mxu0
    %v355 = vadd.f32 0.0, %v354
    %v356 = vpop.f32.mrb[0].mxu0
    %v357 = vpop.f32.mrb[0].mxu0
    %v358 = vpop.f32.mrb[0].mxu0
    %359 = vdwg.mxu0
    %v360 = vpack.c.bf16 %v355, %v307
    %361 = vst.msk [vmem:[#allocation2] sm:$0xff] %vm143, %v360
    %362 = vrot.lane.b32.xlu0 %v138, 120
    %v363 = vpop.permute.xlu0 %362
    %364 = vrot.lane.b32.xlu0 %v138, 88
    %v365 = vpop.permute.xlu0 %364
    %v367 = vsel %vm143, %v363, 0
    %v370 = vsel %vm143, %v365, 0
    %372 = vmatprep.subr.bf16.mxu0 0
    %373 = vmatpush1.bf16.xpose.msra.mxu0 %v370
    %374 = vmatprep.subr.bf16.mxu0 0
    %375 = vmatpush1.bf16.xpose.msra.mxu0 0
    %376 = vmatprep.subr.bf16.mxu0 0
    %377 = vmatpush1.bf16.xpose.msra.mxu0 0
    %378 = vmatprep.subr.bf16.mxu0 0
    %379 = vmatpush1.bf16.xpose.msra.mxu0 0
    %380 = vmatprep.subr.bf16.mxu0 0
    %381 = vmatpush1.bf16.xpose.msra.mxu0 0
    %382 = vmatprep.subr.bf16.mxu0 0
    %383 = vmatpush1.bf16.xpose.msra.mxu0 0
    %384 = vmatprep.subr.bf16.mxu0 0
    %385 = vmatpush1.bf16.xpose.msra.mxu0 0
    %386 = vmatprep.subr.bf16.mxu0 0
    %387 = vmatpush1.bf16.xpose.msra.mxu0 0
    %388 = vmatprep.subr.bf16.mxu0 0
    %389 = vmatpush1.bf16.xpose.msra.mxu0 0
    %390 = vmatprep.subr.bf16.mxu0 0
    %391 = vmatpush1.bf16.xpose.msra.mxu0 0
    %392 = vmatprep.subr.bf16.mxu0 0
    %393 = vmatpush1.bf16.xpose.msra.mxu0 0
    %394 = vmatprep.subr.bf16.mxu0 0
    %395 = vmatpush1.bf16.xpose.msra.mxu0 0
    %396 = vmatprep.subr.bf16.mxu0 0
    %397 = vmatpush1.bf16.xpose.msra.mxu0 0
    %398 = vmatprep.subr.bf16.mxu0 0
    %399 = vmatpush1.bf16.xpose.msra.mxu0 0
    %400 = vmatprep.subr.bf16.mxu0 0
    %401 = vmatpush1.bf16.xpose.msra.mxu0 0
    %402 = vmatprep.subr.bf16.mxu0 0
    %403 = vmatpush1.bf16.xpose.msra.mxu0 0
    %404 = vmatprep.mubr.bf16.mxu0 0
    %405 = vmatmul.mubr.bf16.gmra.mrb[0].mxu0 %v367
    %v406 = vpop.f32.mrb[0].mxu0
    %v407 = vadd.f32 0.0, %v406
    %v408 = vpop.f32.mrb[0].mxu0
    %v409 = vpop.f32.mrb[0].mxu0
    %v410 = vpop.f32.mrb[0].mxu0
    %411 = vdwg.mxu0
    %412 = vrot.lane.b32.xlu0 %v139, 120
    %v413 = vpop.permute.xlu0 %412
    %414 = vrot.lane.b32.xlu0 %v139, 88
    %v415 = vpop.permute.xlu0 %414
    %v417 = vsel %vm143, %v413, 0
    %v420 = vsel %vm143, %v415, 0
    %422 = vmatprep.subr.bf16.mxu0 0
    %423 = vmatpush1.bf16.xpose.msra.mxu0 %v420
    %424 = vmatprep.subr.bf16.mxu0 0
    %425 = vmatpush1.bf16.xpose.msra.mxu0 0
    %426 = vmatprep.subr.bf16.mxu0 0
    %427 = vmatpush1.bf16.xpose.msra.mxu0 0
    %428 = vmatprep.subr.bf16.mxu0 0
    %429 = vmatpush1.bf16.xpose.msra.mxu0 0
    %430 = vmatprep.subr.bf16.mxu0 0
    %431 = vmatpush1.bf16.xpose.msra.mxu0 0
    %432 = vmatprep.subr.bf16.mxu0 0
    %433 = vmatpush1.bf16.xpose.msra.mxu0 0
    %434 = vmatprep.subr.bf16.mxu0 0
    %435 = vmatpush1.bf16.xpose.msra.mxu0 0
    %436 = vmatprep.subr.bf16.mxu0 0
    %437 = vmatpush1.bf16.xpose.msra.mxu0 0
    %438 = vmatprep.subr.bf16.mxu0 0
    %439 = vmatpush1.bf16.xpose.msra.mxu0 0
    %440 = vmatprep.subr.bf16.mxu0 0
    %441 = vmatpush1.bf16.xpose.msra.mxu0 0
    %442 = vmatprep.subr.bf16.mxu0 0
    %443 = vmatpush1.bf16.xpose.msra.mxu0 0
    %444 = vmatprep.subr.bf16.mxu0 0
    %445 = vmatpush1.bf16.xpose.msra.mxu0 0
    %446 = vmatprep.subr.bf16.mxu0 0
    %447 = vmatpush1.bf16.xpose.msra.mxu0 0
    %448 = vmatprep.subr.bf16.mxu0 0
    %449 = vmatpush1.bf16.xpose.msra.mxu0 0
    %450 = vmatprep.subr.bf16.mxu0 0
    %451 = vmatpush1.bf16.xpose.msra.mxu0 0
    %452 = vmatprep.subr.bf16.mxu0 0
    %453 = vmatpush1.bf16.xpose.msra.mxu0 0
    %454 = vmatprep.mubr.bf16.mxu0 0
    %455 = vmatmul.mubr.bf16.gmra.mrb[0].mxu0 %v417
    %v456 = vpop.f32.mrb[0].mxu0
    %v457 = vadd.f32 0.0, %v456
    %v458 = vpop.f32.mrb[0].mxu0
    %v459 = vpop.f32.mrb[0].mxu0
    %v460 = vpop.f32.mrb[0].mxu0
    %461 = vdwg.mxu0
    %v462 = vsel %vm143, %v407, -inf
    %463 = vmax.xlane.f32.xlu0 %v462
    %v464 = vpop.xlane.xlu0 %463
    %v465 = vsel %vm143, %v457, -inf
    %466 = vmax.xlane.f32.xlu0 %v465
    %v467 = vpop.xlane.xlu0 %466
    %v468 = vsub.f32 %v407, %v464
    %v469 = vsub.f32 %v457, %v467
    %v470 = vmul.f32 %v468, 1.442695
    %v471 = vpow.pop %v470
    %v472 = vmul.f32 %v469, 1.442695
    %v473 = vpow.pop %v472
    %v474 = vsel %vm143, %v471, 0.0
    %475 = vadd.xlane.f32.xlu0 %v474
    %v476 = vpop.xlane.xlu0 %475
    %v477 = vsel %vm143, %v473, 0.0
    %478 = vadd.xlane.f32.xlu0 %v477
    %v479 = vpop.xlane.xlu0 %478
    %v480 = vrcp.pop %v476
    %v481 = vrcp.pop %v479
    %v482 = vmul.f32 %v471, %v480
    %v483 = vmul.f32 %v473, %v481
    %v484 = vpack.c.bf16 %v482, %v482
    %v485 = vpack.c.bf16 %v483, %v483
    %486 = vrot.lane.b32.xlu0 %v138, 56
    %v487 = vpop.permute.xlu0 %486
    %v489 = vsel %vm143, %v484, 0
    %v492 = vsel %vm268, %v487, 0
    %494 = vmatprep.subr.bf16.mxu0 0
    %495 = vmatpush1.bf16.msra.mxu0 %v492
    %496 = vmatprep.subr.bf16.mxu0 0
    %497 = vmatpush1.bf16.msra.mxu0 0
    %498 = vmatprep.subr.bf16.mxu0 0
    %499 = vmatpush1.bf16.msra.mxu0 0
    %500 = vmatprep.subr.bf16.mxu0 0
    %501 = vmatpush1.bf16.msra.mxu0 0
    %502 = vmatprep.subr.bf16.mxu0 0
    %503 = vmatpush1.bf16.msra.mxu0 0
    %504 = vmatprep.subr.bf16.mxu0 0
    %505 = vmatpush1.bf16.msra.mxu0 0
    %506 = vmatprep.subr.bf16.mxu0 0
    %507 = vmatpush1.bf16.msra.mxu0 0
    %508 = vmatprep.subr.bf16.mxu0 0
    %509 = vmatpush1.bf16.msra.mxu0 0
    %510 = vmatprep.subr.bf16.mxu0 0
    %511 = vmatpush1.bf16.msra.mxu0 0
    %512 = vmatprep.subr.bf16.mxu0 0
    %513 = vmatpush1.bf16.msra.mxu0 0
    %514 = vmatprep.subr.bf16.mxu0 0
    %515 = vmatpush1.bf16.msra.mxu0 0
    %516 = vmatprep.subr.bf16.mxu0 0
    %517 = vmatpush1.bf16.msra.mxu0 0
    %518 = vmatprep.subr.bf16.mxu0 0
    %519 = vmatpush1.bf16.msra.mxu0 0
    %520 = vmatprep.subr.bf16.mxu0 0
    %521 = vmatpush1.bf16.msra.mxu0 0
    %522 = vmatprep.subr.bf16.mxu0 0
    %523 = vmatpush1.bf16.msra.mxu0 0
    %524 = vmatprep.subr.bf16.mxu0 0
    %525 = vmatpush1.bf16.msra.mxu0 0
    %526 = vmatprep.mubr.bf16.mxu0 0
    %527 = vmatmul.mubr.bf16.gmra.mrb[0].mxu0 %v489
    %v528 = vpop.f32.mrb[0].mxu0
    %v529 = vadd.f32 0.0, %v528
    %v530 = vpop.f32.mrb[0].mxu0
    %v531 = vpop.f32.mrb[0].mxu0
    %v532 = vpop.f32.mrb[0].mxu0
    %533 = vdwg.mxu0
    %534 = vrot.lane.b32.xlu0 %v139, 56
    %v535 = vpop.permute.xlu0 %534
    %v537 = vsel %vm143, %v485, 0
    %v540 = vsel %vm268, %v535, 0
    %542 = vmatprep.subr.bf16.mxu0 0
    %543 = vmatpush1.bf16.msra.mxu0 %v540
    %544 = vmatprep.subr.bf16.mxu0 0
    %545 = vmatpush1.bf16.msra.mxu0 0
    %546 = vmatprep.subr.bf16.mxu0 0
    %547 = vmatpush1.bf16.msra.mxu0 0
    %548 = vmatprep.subr.bf16.mxu0 0
    %549 = vmatpush1.bf16.msra.mxu0 0
    %550 = vmatprep.subr.bf16.mxu0 0
    %551 = vmatpush1.bf16.msra.mxu0 0
    %552 = vmatprep.subr.bf16.mxu0 0
    %553 = vmatpush1.bf16.msra.mxu0 0
    %554 = vmatprep.subr.bf16.mxu0 0
    %555 = vmatpush1.bf16.msra.mxu0 0
    %556 = vmatprep.subr.bf16.mxu0 0
    %557 = vmatpush1.bf16.msra.mxu0 0
    %558 = vmatprep.subr.bf16.mxu0 0
    %559 = vmatpush1.bf16.msra.mxu0 0
    %560 = vmatprep.subr.bf16.mxu0 0
    %561 = vmatpush1.bf16.msra.mxu0 0
    %562 = vmatprep.subr.bf16.mxu0 0
    %563 = vmatpush1.bf16.msra.mxu0 0
    %564 = vmatprep.subr.bf16.mxu0 0
    %565 = vmatpush1.bf16.msra.mxu0 0
    %566 = vmatprep.subr.bf16.mxu0 0
    %567 = vmatpush1.bf16.msra.mxu0 0
    %568 = vmatprep.subr.bf16.mxu0 0
    %569 = vmatpush1.bf16.msra.mxu0 0
    %570 = vmatprep.subr.bf16.mxu0 0
    %571 = vmatpush1.bf16.msra.mxu0 0
    %572 = vmatprep.subr.bf16.mxu0 0
    %573 = vmatpush1.bf16.msra.mxu0 0
    %574 = vmatprep.mubr.bf16.mxu0 0
    %575 = vmatmul.mubr.bf16.gmra.mrb[0].mxu0 %v537
    %v576 = vpop.f32.mrb[0].mxu0
    %v577 = vadd.f32 0.0, %v576
    %v578 = vpop.f32.mrb[0].mxu0
    %v579 = vpop.f32.mrb[0].mxu0
    %v580 = vpop.f32.mrb[0].mxu0
    %581 = vdwg.mxu0
    %v582 = vpack.c.bf16 %v577, %v529
    %584 = vrot.lane.b32.xlu0 %v582, 8
    %v585 = vpop.permute.xlu0 %584
    %vm587 = vcmask 130112
    %588 = vst.msk [vmem:[#allocation2] sm:$0xff] %vm587, %v585
    %589 = vrot.lane.b32.xlu0 %v138, 112
    %v590 = vpop.permute.xlu0 %589
    %591 = vrot.lane.b32.xlu0 %v138, 80
    %v592 = vpop.permute.xlu0 %591
    %v594 = vsel %vm143, %v590, 0
    %v597 = vsel %vm143, %v592, 0
    %599 = vmatprep.subr.bf16.mxu0 0
    %600 = vmatpush1.bf16.xpose.msra.mxu0 %v597
    %601 = vmatprep.subr.bf16.mxu0 0
    %602 = vmatpush1.bf16.xpose.msra.mxu0 0
    %603 = vmatprep.subr.bf16.mxu0 0
    %604 = vmatpush1.bf16.xpose.msra.mxu0 0
    %605 = vmatprep.subr.bf16.mxu0 0
    %606 = vmatpush1.bf16.xpose.msra.mxu0 0
    %607 = vmatprep.subr.bf16.mxu0 0
    %608 = vmatpush1.bf16.xpose.msra.mxu0 0
    %609 = vmatprep.subr.bf16.mxu0 0
    %610 = vmatpush1.bf16.xpose.msra.mxu0 0
    %611 = vmatprep.subr.bf16.mxu0 0
    %612 = vmatpush1.bf16.xpose.msra.mxu0 0
    %613 = vmatprep.subr.bf16.mxu0 0
    %614 = vmatpush1.bf16.xpose.msra.mxu0 0
    %615 = vmatprep.subr.bf16.mxu0 0
    %616 = vmatpush1.bf16.xpose.msra.mxu0 0
    %617 = vmatprep.subr.bf16.mxu0 0
    %618 = vmatpush1.bf16.xpose.msra.mxu0 0
    %619 = vmatprep.subr.bf16.mxu0 0
    %620 = vmatpush1.bf16.xpose.msra.mxu0 0
    %621 = vmatprep.subr.bf16.mxu0 0
    %622 = vmatpush1.bf16.xpose.msra.mxu0 0
    %623 = vmatprep.subr.bf16.mxu0 0
    %624 = vmatpush1.bf16.xpose.msra.mxu0 0
    %625 = vmatprep.subr.bf16.mxu0 0
    %626 = vmatpush1.bf16.xpose.msra.mxu0 0
    %627 = vmatprep.subr.bf16.mxu0 0
    %628 = vmatpush1.bf16.xpose.msra.mxu0 0
    %629 = vmatprep.subr.bf16.mxu0 0
    %630 = vmatpush1.bf16.xpose.msra.mxu0 0
    %631 = vmatprep.mubr.bf16.mxu0 0
    %632 = vmatmul.mubr.bf16.gmra.mrb[0].mxu0 %v594
    %v633 = vpop.f32.mrb[0].mxu0
    %v634 = vadd.f32 0.0, %v633
    %v635 = vpop.f32.mrb[0].mxu0
    %v636 = vpop.f32.mrb[0].mxu0
    %v637 = vpop.f32.mrb[0].mxu0
    %638 = vdwg.mxu0
    %639 = vrot.lane.b32.xlu0 %v139, 112
    %v640 = vpop.permute.xlu0 %639
    %641 = vrot.lane.b32.xlu0 %v139, 80
    %v642 = vpop.permute.xlu0 %641
    %v644 = vsel %vm143, %v640, 0
    %v647 = vsel %vm143, %v642, 0
    %649 = vmatprep.subr.bf16.mxu0 0
    %650 = vmatpush1.bf16.xpose.msra.mxu0 %v647
    %651 = vmatprep.subr.bf16.mxu0 0
    %652 = vmatpush1.bf16.xpose.msra.mxu0 0
    %653 = vmatprep.subr.bf16.mxu0 0
    %654 = vmatpush1.bf16.xpose.msra.mxu0 0
    %655 = vmatprep.subr.bf16.mxu0 0
    %656 = vmatpush1.bf16.xpose.msra.mxu0 0
    %657 = vmatprep.subr.bf16.mxu0 0
    %658 = vmatpush1.bf16.xpose.msra.mxu0 0
    %659 = vmatprep.subr.bf16.mxu0 0
    %660 = vmatpush1.bf16.xpose.msra.mxu0 0
    %661 = vmatprep.subr.bf16.mxu0 0
    %662 = vmatpush1.bf16.xpose.msra.mxu0 0
    %663 = vmatprep.subr.bf16.mxu0 0
    %664 = vmatpush1.bf16.xpose.msra.mxu0 0
    %665 = vmatprep.subr.bf16.mxu0 0
    %666 = vmatpush1.bf16.xpose.msra.mxu0 0
    %667 = vmatprep.subr.bf16.mxu0 0
    %668 = vmatpush1.bf16.xpose.msra.mxu0 0
    %669 = vmatprep.subr.bf16.mxu0 0
    %670 = vmatpush1.bf16.xpose.msra.mxu0 0
    %671 = vmatprep.subr.bf16.mxu0 0
    %672 = vmatpush1.bf16.xpose.msra.mxu0 0
    %673 = vmatprep.subr.bf16.mxu0 0
    %674 = vmatpush1.bf16.xpose.msra.mxu0 0
    %675 = vmatprep.subr.bf16.mxu0 0
    %676 = vmatpush1.bf16.xpose.msra.mxu0 0
    %677 = vmatprep.subr.bf16.mxu0 0
    %678 = vmatpush1.bf16.xpose.msra.mxu0 0
    %679 = vmatprep.subr.bf16.mxu0 0
    %680 = vmatpush1.bf16.xpose.msra.mxu0 0
    %681 = vmatprep.mubr.bf16.mxu0 0
    %682 = vmatmul.mubr.bf16.gmra.mrb[0].mxu0 %v644
    %v683 = vpop.f32.mrb[0].mxu0
    %v684 = vadd.f32 0.0, %v683
    %v685 = vpop.f32.mrb[0].mxu0
    %v686 = vpop.f32.mrb[0].mxu0
    %v687 = vpop.f32.mrb[0].mxu0
    %688 = vdwg.mxu0
    %v689 = vsel %vm143, %v634, -inf
    %690 = vmax.xlane.f32.xlu0 %v689
    %v691 = vpop.xlane.xlu0 %690
    %v692 = vsel %vm143, %v684, -inf
    %693 = vmax.xlane.f32.xlu0 %v692
    %v694 = vpop.xlane.xlu0 %693
    %v695 = vsub.f32 %v634, %v691
    %v696 = vsub.f32 %v684, %v694
    %v697 = vmul.f32 %v695, 1.442695
    %v698 = vpow.pop %v697
    %v699 = vmul.f32 %v696, 1.442695
    %v700 = vpow.pop %v699
    %v701 = vsel %vm143, %v698, 0.0
    %702 = vadd.xlane.f32.xlu0 %v701
    %v703 = vpop.xlane.xlu0 %702
    %v704 = vsel %vm143, %v700, 0.0
    %705 = vadd.xlane.f32.xlu0 %v704
    %v706 = vpop.xlane.xlu0 %705
    %v707 = vrcp.pop %v703
    %v708 = vrcp.pop %v706
    %v709 = vmul.f32 %v698, %v707
    %v710 = vmul.f32 %v700, %v708
    %v711 = vpack.c.bf16 %v709, %v709
    %v712 = vpack.c.bf16 %v710, %v710
    %713 = vrot.lane.b32.xlu0 %v138, 48
    %v714 = vpop.permute.xlu0 %713
    %v716 = vsel %vm143, %v711, 0
    %v719 = vsel %vm268, %v714, 0
    %721 = vmatprep.subr.bf16.mxu0 0
    %722 = vmatpush1.bf16.msra.mxu0 %v719
    %723 = vmatprep.subr.bf16.mxu0 0
    %724 = vmatpush1.bf16.msra.mxu0 0
    %725 = vmatprep.subr.bf16.mxu0 0
    %726 = vmatpush1.bf16.msra.mxu0 0
    %727 = vmatprep.subr.bf16.mxu0 0
    %728 = vmatpush1.bf16.msra.mxu0 0
    %729 = vmatprep.subr.bf16.mxu0 0
    %730 = vmatpush1.bf16.msra.mxu0 0
    %731 = vmatprep.subr.bf16.mxu0 0
    %732 = vmatpush1.bf16.msra.mxu0 0
    %733 = vmatprep.subr.bf16.mxu0 0
    %734 = vmatpush1.bf16.msra.mxu0 0
    %735 = vmatprep.subr.bf16.mxu0 0
    %736 = vmatpush1.bf16.msra.mxu0 0
    %737 = vmatprep.subr.bf16.mxu0 0
    %738 = vmatpush1.bf16.msra.mxu0 0
    %739 = vmatprep.subr.bf16.mxu0 0
    %740 = vmatpush1.bf16.msra.mxu0 0
    %741 = vmatprep.subr.bf16.mxu0 0
    %742 = vmatpush1.bf16.msra.mxu0 0
    %743 = vmatprep.subr.bf16.mxu0 0
    %744 = vmatpush1.bf16.msra.mxu0 0
    %745 = vmatprep.subr.bf16.mxu0 0
    %746 = vmatpush1.bf16.msra.mxu0 0
    %747 = vmatprep.subr.bf16.mxu0 0
    %748 = vmatpush1.bf16.msra.mxu0 0
    %749 = vmatprep.subr.bf16.mxu0 0
    %750 = vmatpush1.bf16.msra.mxu0 0
    %751 = vmatprep.subr.bf16.mxu0 0
    %752 = vmatpush1.bf16.msra.mxu0 0
    %753 = vmatprep.mubr.bf16.mxu0 0
    %754 = vmatmul.mubr.bf16.gmra.mrb[0].mxu0 %v716
    %v755 = vpop.f32.mrb[0].mxu0
    %v756 = vadd.f32 0.0, %v755
    %v757 = vpop.f32.mrb[0].mxu0
    %v758 = vpop.f32.mrb[0].mxu0
    %v759 = vpop.f32.mrb[0].mxu0
    %760 = vdwg.mxu0
    %761 = vrot.lane.b32.xlu0 %v139, 48
    %v762 = vpop.permute.xlu0 %761
    %v764 = vsel %vm143, %v712, 0
    %v767 = vsel %vm268, %v762, 0
    %769 = vmatprep.subr.bf16.mxu0 0
    %770 = vmatpush1.bf16.msra.mxu0 %v767
    %771 = vmatprep.subr.bf16.mxu0 0
    %772 = vmatpush1.bf16.msra.mxu0 0
    %773 = vmatprep.subr.bf16.mxu0 0
    %774 = vmatpush1.bf16.msra.mxu0 0
    %775 = vmatprep.subr.bf16.mxu0 0
    %776 = vmatpush1.bf16.msra.mxu0 0
    %777 = vmatprep.subr.bf16.mxu0 0
    %778 = vmatpush1.bf16.msra.mxu0 0
    %779 = vmatprep.subr.bf16.mxu0 0
    %780 = vmatpush1.bf16.msra.mxu0 0
    %781 = vmatprep.subr.bf16.mxu0 0
    %782 = vmatpush1.bf16.msra.mxu0 0
    %783 = vmatprep.subr.bf16.mxu0 0
    %784 = vmatpush1.bf16.msra.mxu0 0
    %785 = vmatprep.subr.bf16.mxu0 0
    %786 = vmatpush1.bf16.msra.mxu0 0
    %787 = vmatprep.subr.bf16.mxu0 0
    %788 = vmatpush1.bf16.msra.mxu0 0
    %789 = vmatprep.subr.bf16.mxu0 0
    %790 = vmatpush1.bf16.msra.mxu0 0
    %791 = vmatprep.subr.bf16.mxu0 0
    %792 = vmatpush1.bf16.msra.mxu0 0
    %793 = vmatprep.subr.bf16.mxu0 0
    %794 = vmatpush1.bf16.msra.mxu0 0
    %795 = vmatprep.subr.bf16.mxu0 0
    %796 = vmatpush1.bf16.msra.mxu0 0
    %797 = vmatprep.subr.bf16.mxu0 0
    %798 = vmatpush1.bf16.msra.mxu0 0
    %799 = vmatprep.subr.bf16.mxu0 0
    %800 = vmatpush1.bf16.msra.mxu0 0
    %801 = vmatprep.mubr.bf16.mxu0 0
    %802 = vmatmul.mubr.bf16.gmra.mrb[0].mxu0 %v764
    %v803 = vpop.f32.mrb[0].mxu0
    %v804 = vadd.f32 0.0, %v803
    %v805 = vpop.f32.mrb[0].mxu0
    %v806 = vpop.f32.mrb[0].mxu0
    %v807 = vpop.f32.mrb[0].mxu0
    %808 = vdwg.mxu0
    %v809 = vpack.c.bf16 %v804, %v756
    %811 = vrot.lane.b32.xlu0 %v809, 16
    %v812 = vpop.permute.xlu0 %811
    %vm814 = vcmask 195712
    %815 = vst.msk [vmem:[#allocation2] sm:$0xff] %vm814, %v812
    %816 = vrot.lane.b32.xlu0 %v138, 104
    %v817 = vpop.permute.xlu0 %816
    %818 = vrot.lane.b32.xlu0 %v138, 72
    %v819 = vpop.permute.xlu0 %818
    %v821 = vsel %vm143, %v817, 0
    %v824 = vsel %vm143, %v819, 0
    %826 = vmatprep.subr.bf16.mxu0 0
    %827 = vmatpush1.bf16.xpose.msra.mxu0 %v824
    %828 = vmatprep.subr.bf16.mxu0 0
    %829 = vmatpush1.bf16.xpose.msra.mxu0 0
    %830 = vmatprep.subr.bf16.mxu0 0
    %831 = vmatpush1.bf16.xpose.msra.mxu0 0
    %832 = vmatprep.subr.bf16.mxu0 0
    %833 = vmatpush1.bf16.xpose.msra.mxu0 0
    %834 = vmatprep.subr.bf16.mxu0 0
    %835 = vmatpush1.bf16.xpose.msra.mxu0 0
    %836 = vmatprep.subr.bf16.mxu0 0
    %837 = vmatpush1.bf16.xpose.msra.mxu0 0
    %838 = vmatprep.subr.bf16.mxu0 0
    %839 = vmatpush1.bf16.xpose.msra.mxu0 0
    %840 = vmatprep.subr.bf16.mxu0 0
    %841 = vmatpush1.bf16.xpose.msra.mxu0 0
    %842 = vmatprep.subr.bf16.mxu0 0
    %843 = vmatpush1.bf16.xpose.msra.mxu0 0
    %844 = vmatprep.subr.bf16.mxu0 0
    %845 = vmatpush1.bf16.xpose.msra.mxu0 0
    %846 = vmatprep.subr.bf16.mxu0 0
    %847 = vmatpush1.bf16.xpose.msra.mxu0 0
    %848 = vmatprep.subr.bf16.mxu0 0
    %849 = vmatpush1.bf16.xpose.msra.mxu0 0
    %850 = vmatprep.subr.bf16.mxu0 0
    %851 = vmatpush1.bf16.xpose.msra.mxu0 0
    %852 = vmatprep.subr.bf16.mxu0 0
    %853 = vmatpush1.bf16.xpose.msra.mxu0 0
    %854 = vmatprep.subr.bf16.mxu0 0
    %855 = vmatpush1.bf16.xpose.msra.mxu0 0
    %856 = vmatprep.subr.bf16.mxu0 0
    %857 = vmatpush1.bf16.xpose.msra.mxu0 0
    %858 = vmatprep.mubr.bf16.mxu0 0
    %859 = vmatmul.mubr.bf16.gmra.mrb[0].mxu0 %v821
    %v860 = vpop.f32.mrb[0].mxu0
    %v861 = vadd.f32 0.0, %v860
    %v862 = vpop.f32.mrb[0].mxu0
    %v863 = vpop.f32.mrb[0].mxu0
    %v864 = vpop.f32.mrb[0].mxu0
    %865 = vdwg.mxu0
    %866 = vrot.lane.b32.xlu0 %v139, 104
    %v867 = vpop.permute.xlu0 %866
    %868 = vrot.lane.b32.xlu0 %v139, 72
    %v869 = vpop.permute.xlu0 %868
    %v871 = vsel %vm143, %v867, 0
    %v874 = vsel %vm143, %v869, 0
    %876 = vmatprep.subr.bf16.mxu0 0
    %877 = vmatpush1.bf16.xpose.msra.mxu0 %v874
    %878 = vmatprep.subr.bf16.mxu0 0
    %879 = vmatpush1.bf16.xpose.msra.mxu0 0
    %880 = vmatprep.subr.bf16.mxu0 0
    %881 = vmatpush1.bf16.xpose.msra.mxu0 0
    %882 = vmatprep.subr.bf16.mxu0 0
    %883 = vmatpush1.bf16.xpose.msra.mxu0 0
    %884 = vmatprep.subr.bf16.mxu0 0
    %885 = vmatpush1.bf16.xpose.msra.mxu0 0
    %886 = vmatprep.subr.bf16.mxu0 0
    %887 = vmatpush1.bf16.xpose.msra.mxu0 0
    %888 = vmatprep.subr.bf16.mxu0 0
    %889 = vmatpush1.bf16.xpose.msra.mxu0 0
    %890 = vmatprep.subr.bf16.mxu0 0
    %891 = vmatpush1.bf16.xpose.msra.mxu0 0
    %892 = vmatprep.subr.bf16.mxu0 0
    %893 = vmatpush1.bf16.xpose.msra.mxu0 0
    %894 = vmatprep.subr.bf16.mxu0 0
    %895 = vmatpush1.bf16.xpose.msra.mxu0 0
    %896 = vmatprep.subr.bf16.mxu0 0
    %897 = vmatpush1.bf16.xpose.msra.mxu0 0
    %898 = vmatprep.subr.bf16.mxu0 0
    %899 = vmatpush1.bf16.xpose.msra.mxu0 0
    %900 = vmatprep.subr.bf16.mxu0 0
    %901 = vmatpush1.bf16.xpose.msra.mxu0 0
    %902 = vmatprep.subr.bf16.mxu0 0
    %903 = vmatpush1.bf16.xpose.msra.mxu0 0
    %904 = vmatprep.subr.bf16.mxu0 0
    %905 = vmatpush1.bf16.xpose.msra.mxu0 0
    %906 = vmatprep.subr.bf16.mxu0 0
    %907 = vmatpush1.bf16.xpose.msra.mxu0 0
    %908 = vmatprep.mubr.bf16.mxu0 0
    %909 = vmatmul.mubr.bf16.gmra.mrb[0].mxu0 %v871
    %v910 = vpop.f32.mrb[0].mxu0
    %v911 = vadd.f32 0.0, %v910
    %v912 = vpop.f32.mrb[0].mxu0
    %v913 = vpop.f32.mrb[0].mxu0
    %v914 = vpop.f32.mrb[0].mxu0
    %915 = vdwg.mxu0
    %v916 = vsel %vm143, %v861, -inf
    %917 = vmax.xlane.f32.xlu0 %v916
    %v918 = vpop.xlane.xlu0 %917
    %v919 = vsel %vm143, %v911, -inf
    %920 = vmax.xlane.f32.xlu0 %v919
    %v921 = vpop.xlane.xlu0 %920
    %v922 = vsub.f32 %v861, %v918
    %v923 = vsub.f32 %v911, %v921
    %v924 = vmul.f32 %v922, 1.442695
    %v925 = vpow.pop %v924
    %v926 = vmul.f32 %v923, 1.442695
    %v927 = vpow.pop %v926
    %v928 = vsel %vm143, %v925, 0.0
    %929 = vadd.xlane.f32.xlu0 %v928
    %v930 = vpop.xlane.xlu0 %929
    %v931 = vsel %vm143, %v927, 0.0
    %932 = vadd.xlane.f32.xlu0 %v931
    %v933 = vpop.xlane.xlu0 %932
    %v934 = vrcp.pop %v930
    %v935 = vrcp.pop %v933
    %v936 = vmul.f32 %v925, %v934
    %v937 = vmul.f32 %v927, %v935
    %v938 = vpack.c.bf16 %v936, %v936
    %v939 = vpack.c.bf16 %v937, %v937
    %940 = vrot.lane.b32.xlu0 %v138, 40
    %v941 = vpop.permute.xlu0 %940
    %v943 = vsel %vm143, %v938, 0
    %v946 = vsel %vm268, %v941, 0
    %948 = vmatprep.subr.bf16.mxu0 0
    %949 = vmatpush1.bf16.msra.mxu0 %v946
    %950 = vmatprep.subr.bf16.mxu0 0
    %951 = vmatpush1.bf16.msra.mxu0 0
    %952 = vmatprep.subr.bf16.mxu0 0
    %953 = vmatpush1.bf16.msra.mxu0 0
    %954 = vmatprep.subr.bf16.mxu0 0
    %955 = vmatpush1.bf16.msra.mxu0 0
    %956 = vmatprep.subr.bf16.mxu0 0
    %957 = vmatpush1.bf16.msra.mxu0 0
    %958 = vmatprep.subr.bf16.mxu0 0
    %959 = vmatpush1.bf16.msra.mxu0 0
    %960 = vmatprep.subr.bf16.mxu0 0
    %961 = vmatpush1.bf16.msra.mxu0 0
    %962 = vmatprep.subr.bf16.mxu0 0
    %963 = vmatpush1.bf16.msra.mxu0 0
    %964 = vmatprep.subr.bf16.mxu0 0
    %965 = vmatpush1.bf16.msra.mxu0 0
    %966 = vmatprep.subr.bf16.mxu0 0
    %967 = vmatpush1.bf16.msra.mxu0 0
    %968 = vmatprep.subr.bf16.mxu0 0
    %969 = vmatpush1.bf16.msra.mxu0 0
    %970 = vmatprep.subr.bf16.mxu0 0
    %971 = vmatpush1.bf16.msra.mxu0 0
    %972 = vmatprep.subr.bf16.mxu0 0
    %973 = vmatpush1.bf16.msra.mxu0 0
    %974 = vmatprep.subr.bf16.mxu0 0
    %975 = vmatpush1.bf16.msra.mxu0 0
    %976 = vmatprep.subr.bf16.mxu0 0
    %977 = vmatpush1.bf16.msra.mxu0 0
    %978 = vmatprep.subr.bf16.mxu0 0
    %979 = vmatpush1.bf16.msra.mxu0 0
    %980 = vmatprep.mubr.bf16.mxu0 0
    %981 = vmatmul.mubr.bf16.gmra.mrb[0].mxu0 %v943
    %v982 = vpop.f32.mrb[0].mxu0
    %v983 = vadd.f32 0.0, %v982
    %v984 = vpop.f32.mrb[0].mxu0
    %v985 = vpop.f32.mrb[0].mxu0
    %v986 = vpop.f32.mrb[0].mxu0
    %987 = vdwg.mxu0
    %988 = vrot.lane.b32.xlu0 %v139, 40
    %v989 = vpop.permute.xlu0 %988
    %v991 = vsel %vm143, %v939, 0
    %v994 = vsel %vm268, %v989, 0
    %996 = vmatprep.subr.bf16.mxu0 0
    %997 = vmatpush1.bf16.msra.mxu0 %v994
    %998 = vmatprep.subr.bf16.mxu0 0
    %999 = vmatpush1.bf16.msra.mxu0 0
    %1000 = vmatprep.subr.bf16.mxu0 0
    %1001 = vmatpush1.bf16.msra.mxu0 0
    %1002 = vmatprep.subr.bf16.mxu0 0
    %1003 = vmatpush1.bf16.msra.mxu0 0
    %1004 = vmatprep.subr.bf16.mxu0 0
    %1005 = vmatpush1.bf16.msra.mxu0 0
    %1006 = vmatprep.subr.bf16.mxu0 0
    %1007 = vmatpush1.bf16.msra.mxu0 0
    %1008 = vmatprep.subr.bf16.mxu0 0
    %1009 = vmatpush1.bf16.msra.mxu0 0
    %1010 = vmatprep.subr.bf16.mxu0 0
    %1011 = vmatpush1.bf16.msra.mxu0 0
    %1012 = vmatprep.subr.bf16.mxu0 0
    %1013 = vmatpush1.bf16.msra.mxu0 0
    %1014 = vmatprep.subr.bf16.mxu0 0
    %1015 = vmatpush1.bf16.msra.mxu0 0
    %1016 = vmatprep.subr.bf16.mxu0 0
    %1017 = vmatpush1.bf16.msra.mxu0 0
    %1018 = vmatprep.subr.bf16.mxu0 0
    %1019 = vmatpush1.bf16.msra.mxu0 0
    %1020 = vmatprep.subr.bf16.mxu0 0
    %1021 = vmatpush1.bf16.msra.mxu0 0
    %1022 = vmatprep.subr.bf16.mxu0 0
    %1023 = vmatpush1.bf16.msra.mxu0 0
    %1024 = vmatprep.subr.bf16.mxu0 0
    %1025 = vmatpush1.bf16.msra.mxu0 0
    %1026 = vmatprep.subr.bf16.mxu0 0
    %1027 = vmatpush1.bf16.msra.mxu0 0
    %1028 = vmatprep.mubr.bf16.mxu0 0
    %1029 = vmatmul.mubr.bf16.gmra.mrb[0].mxu0 %v991
    %v1030 = vpop.f32.mrb[0].mxu0
    %v1031 = vadd.f32 0.0, %v1030
    %v1032 = vpop.f32.mrb[0].mxu0
    %v1033 = vpop.f32.mrb[0].mxu0
    %v1034 = vpop.f32.mrb[0].mxu0
    %1035 = vdwg.mxu0
    %v1036 = vpack.c.bf16 %v1031, %v983
    %1038 = vrot.lane.b32.xlu0 %v1036, 24
    %v1039 = vpop.permute.xlu0 %1038
    %vm1041 = vcmask 261312
    %1042 = vst.msk [vmem:[#allocation2] sm:$0xff] %vm1041, %v1039
    %v1043 = vld [vmem:[#allocation2] sm:$0xff]
    %v1044 = vld [vmem:[#allocation8] sm:$0xf]
    %v1045 = vld [vmem:[#allocation8 + $0x4] sm:$0xf]
    %v1046 = vld [vmem:[#allocation8 + $0x8] sm:$0xf]
    %v1047 = vld [vmem:[#allocation8 + $0xc] sm:$0xf]
    %v1048 = vld [vmem:[%s4] sm:$0x1]
    %v1050 = vlaneseq
    %v1051 = vshrl.u32 %v1050, 7
    %v1052 = vsub.s32 0, %v1051
    %v1053 = vrot.slane %v1048, %v1052
    %v1059 = vunpack.c.l.b16 %v1044
    %v1060 = vunpack.c.l.b16 %v1045
    %v1061 = vunpack.c.l.b16 %v1046
    %v1062 = vunpack.c.l.b16 %v1047
    %v1063 = vpack.c.b16 %v1060, %v1059
    %v1064 = vpack.c.b16 %v1062, %v1061
    %v1068 = vsel %vm93, %v1043, 0
    %1070 = vmatprep.subr.bf16.mxu0 0
    %1071 = vmatpush1.bf16.msra.mxu0 %v1063
    %1072 = vmatprep.subr.bf16.mxu0 0
    %1073 = vmatpush1.bf16.msra.mxu0 %v1064
    %1074 = vmatprep.subr.bf16.mxu0 0
    %1075 = vmatpush1.bf16.msra.mxu0 0
    %1076 = vmatprep.subr.bf16.mxu0 0
    %1077 = vmatpush1.bf16.msra.mxu0 0
    %1078 = vmatprep.subr.bf16.mxu0 0
    %1079 = vmatpush1.bf16.msra.mxu0 0
    %1080 = vmatprep.subr.bf16.mxu0 0
    %1081 = vmatpush1.bf16.msra.mxu0 0
    %1082 = vmatprep.subr.bf16.mxu0 0
    %1083 = vmatpush1.bf16.msra.mxu0 0
    %1084 = vmatprep.subr.bf16.mxu0 0
    %1085 = vmatpush1.bf16.msra.mxu0 0
    %1086 = vmatprep.subr.bf16.mxu0 0
    %1087 = vmatpush1.bf16.msra.mxu0 0
    %1088 = vmatprep.subr.bf16.mxu0 0
    %1089 = vmatpush1.bf16.msra.mxu0 0
    %1090 = vmatprep.subr.bf16.mxu0 0
    %1091 = vmatpush1.bf16.msra.mxu0 0
    %1092 = vmatprep.subr.bf16.mxu0 0
    %1093 = vmatpush1.bf16.msra.mxu0 0
    %1094 = vmatprep.subr.bf16.mxu0 0
    %1095 = vmatpush1.bf16.msra.mxu0 0
    %1096 = vmatprep.subr.bf16.mxu0 0
    %1097 = vmatpush1.bf16.msra.mxu0 0
    %1098 = vmatprep.subr.bf16.mxu0 0
    %1099 = vmatpush1.bf16.msra.mxu0 0
    %1100 = vmatprep.subr.bf16.mxu0 0
    %1101 = vmatpush1.bf16.msra.mxu0 0
    %1102 = vmatprep.mubr.bf16.mxu0 0
    %1103 = vmatmul.mubr.bf16.gmra.mrb[0].mxu0 %v1068
    %v1104 = vpop.f32.mrb[0].mxu0
    %v1105 = vadd.f32 %v1053, %v1104
    %v1106 = vpop.f32.mrb[0].mxu0
    %v1107 = vpop.f32.mrb[0].mxu0
    %v1108 = vadd.f32 %v1053, %v1107
    %v1109 = vpop.f32.mrb[0].mxu0
    %1110 = vdwg.mxu0
    %1111 = vst.msk [vmem:[#allocation9] sm:$0xff] %vm93, %v1105
    %1112 = vst.msk [vmem:[#allocation9 + $0x8] sm:$0xff] %vm93, %v1108
    // Predicated region
    $region34: #{tpu_custom_call.1} parent=1 // pred_check
      _
    $region35: #{tpu_custom_call.1} parent=1 // pred_check_branch
      %1114 = sbr.rel (0) target = $region37
    $region36: #{tpu_custom_call.1} parent=1 // pred_region
      %s1116 = ssub.s32 256, 256
      %1117 = vsyncadd [#allocation5], %s1116
      %s1118 = sshll.u32 [#allocation9], 4
      %s1119 = int_to_ptr.vmem [resolvable:$true] %s1118
      %1124 = dma.vmem_to_hbm [thread:$0]  %s1119, 256, %s5, [#allocation5], 128, 128, 8
    $region37: #{tpu_custom_call.1} parent=1 // pred_fallthru
      _
    // Predicated region
    $region38: #{tpu_custom_call.1} parent=1 // pred_check
      _
    $region39: #{tpu_custom_call.1} parent=1 // pred_check_branch
      %1126 = sbr.rel (0) target = $region41
    $region40: #{tpu_custom_call.1} parent=1 // pred_region
      %1127 = dma.done [#allocation5], 256
    $region41: #{tpu_custom_call.1} parent=1 // pred_fallthru
      _
    %1128 = vsyncpa [#allocation4], 1
    %1129 = vsyncpa [#allocation7], 1
    %1130 = vsyncpa [#allocation5], 1

</llo_original>
